<compile_context>
chip_gen: v7x
topology: tpu7x:2x2x1
jax: 0.10.0
libtpu: 0.0.40
codegen_flags: <defaults>
</compile_context>

<pallas_src>
import functools
import math

import jax
import jax.numpy as jnp
import numpy as np
from jax import lax
from jax.experimental import pallas as pl
from jax.experimental.pallas import tpu as pltpu


def _mhsa_kernel(xq_ref, xkv_ref, wqt_ref, bq_ref, wkvt_ref, bkv_ref,
                 wpt_ref, bp_ref, out_ref,
                 q_scr, m_scr, l_scr, acc_scr,
                 *, n_heads: int, use_mask: bool):
    """One (batch, q_tile, kv_tile) grid step.

    xq_ref  : (1, tq,  C)   input rows for this query tile (resident over ki)
    xkv_ref : (1, tkv, C)   input rows for this kv tile
    wqt_ref : (C, C)        Wq.T            (resident, constant index_map)
    bq_ref  : (1, C)        bq
    wkvt_ref: (C, 2C)       [Wk.T | Wv.T]   (resident)
    bkv_ref : (1, 2C)       [bk | bv]
    wpt_ref : (C, C)        Wproj.T         (resident)
    bp_ref  : (1, C)        bproj
    out_ref : (1, tq, C)    output tile, written once at the last kv step
    q_scr   : (tq, C)  bf16 scaled query projection for this q tile
    m_scr   : (tq, H)  f32  running row max per head
    l_scr   : (tq, H)  f32  running softmax denominator per head
    acc_scr : (tq, C)  f32  per-head attention outputs (column slot per head)
    """
    qi = pl.program_id(1)
    ki = pl.program_id(2)
    nk = pl.num_programs(2)

    tq = xq_ref.shape[1]
    tkv = xkv_ref.shape[1]
    C = wqt_ref.shape[0]
    hd = C // n_heads
    scale = 1.0 / math.sqrt(hd)
    dn_abT = (((1,), (1,)), ((), ()))  # contract last dims: A @ B.T, no transpose

    def attend(first: bool):
        # Fused K/V projection for this kv tile: one full-width (N = 2C) MXU pass.
        xkv = xkv_ref[0].astype(jnp.bfloat16)                          # (tkv, C)
        kvp = (jnp.dot(xkv, wkvt_ref[...],
                       preferred_element_type=jnp.float32)
               + bkv_ref[...]).astype(jnp.bfloat16)                    # (tkv, 2C)

        if use_mask:
            row = lax.broadcasted_iota(jnp.int32, (tq, tkv), 0) + qi * tq
            col = lax.broadcasted_iota(jnp.int32, (tq, tkv), 1) + ki * tkv
            allow = col <= row              # one causal mask, shared by all heads

        if first:
            # Query projection, once per q tile: full-width (N = C) MXU pass with
            # the 1/sqrt(head_dim) score scale folded into q.
            xq = xq_ref[0].astype(jnp.bfloat16)                        # (tq, C)
            q_all = ((jnp.dot(xq, wqt_ref[...],
                              preferred_element_type=jnp.float32)
                      + bq_ref[...]) * scale).astype(jnp.bfloat16)
            q_scr[...] = q_all
        else:
            q_all = q_scr[...]

        for h in range(n_heads):
            fsl = slice(h * hd, (h + 1) * hd)    # this head's feature columns
            hsl = slice(h, h + 1)
            q_h = q_all[:, fsl]                                        # (tq, hd)
            k_h = kvp[:, fsl]                                          # (tkv, hd)
            v_h = kvp[:, C + h * hd: C + (h + 1) * hd]                 # (tkv, hd)

            s = lax.dot_general(q_h, k_h, dn_abT,
                                preferred_element_type=jnp.float32)    # (tq, tkv)
            if use_mask:
                s = jnp.where(allow, s, -jnp.inf)

            m_blk = jnp.max(s, axis=-1, keepdims=True)                 # (tq, 1)
            if first:
                # ki == 0: write softmax state directly (no zero-init + RMW pass).
                p = jnp.exp(s - m_blk)
                m_scr[:, hsl] = m_blk
                l_scr[:, hsl] = jnp.sum(p, axis=-1, keepdims=True)
                acc_scr[:, fsl] = jnp.dot(p.astype(jnp.bfloat16), v_h,
                                          preferred_element_type=jnp.float32)
            else:
                # Online softmax update.
                m_old = m_scr[:, hsl]
                m_new = jnp.maximum(m_old, m_blk)
                alpha = jnp.exp(m_old - m_new)
                p = jnp.exp(s - m_new)
                l_scr[:, hsl] = alpha * l_scr[:, hsl] + jnp.sum(
                    p, axis=-1, keepdims=True)
                acc_scr[:, fsl] = alpha * acc_scr[:, fsl] + jnp.dot(
                    p.astype(jnp.bfloat16), v_h,
                    preferred_element_type=jnp.float32)
                m_scr[:, hsl] = m_new

    # The first kv tile is never above the causal diagonal: it always runs and
    # doubles as the state initializer for this (batch, q_tile).
    @pl.when(ki == 0)
    def _():
        attend(True)

    # Later kv tiles: skip blocks strictly above the diagonal entirely (saves
    # both the K/V projection and the attention matmuls).
    if use_mask:
        later = jnp.logical_and(ki > 0, ki * tkv <= qi * tq + (tq - 1))
    else:
        later = ki > 0

    @pl.when(later)
    def _():
        attend(False)

    # Last kv step: per-head normalization, then ONE full-K output projection.
    @pl.when(ki == nk - 1)
    def _():
        inv_l = pl.reciprocal(l_scr[...], approx=True)                 # (tq, H)
        acc = acc_scr[...]                                             # (tq, C)
        y = jnp.concatenate(
            [(acc[:, h * hd:(h + 1) * hd] * inv_l[:, h:h + 1]).astype(jnp.bfloat16)
             for h in range(n_heads)],
            axis=-1)                                                   # (tq, C)
        out = jnp.dot(y, wpt_ref[...],
                      preferred_element_type=jnp.float32) + bp_ref[...]
        out_ref[0] = out.astype(out_ref.dtype)


def multi_head_self_attention(x, wq, wk, wv, wp, bq, bk, bv, bp, *,
                              n_heads: int, use_mask: bool = True,
                              q_tile=None, kv_tile=None,
                              vmem_limit_bytes: int = 56 * 1024 * 1024):
    """x: (B, T, C) -> (B, T, C).  Weights in PyTorch nn.Linear layout (C, C)."""
    B, T, C = x.shape
    assert C % n_heads == 0, "embed_dim must be divisible by n_heads"
    out_dtype = x.dtype
    cdt = jnp.bfloat16

    # Tile sizes: multiples of the MXU width where possible (128 on v5e,
    # 256 on v6e/v7x); fall back to the full (small) sequence length.
    if q_tile is None:
        q_tile = min(T, 256)
    if kv_tile is None:
        kv_tile = min(T, 256)
    assert T % q_tile == 0 and T % kv_tile == 0, "T must divide by the tiles"

    # One-time host-side weight prep (in practice these would be stored this
    # way): pre-transpose so the kernel never transposes, fuse K and V.
    wqt = wq.T.astype(cdt)                                             # (C, C)
    wkvt = jnp.concatenate([wk.T, wv.T], axis=1).astype(cdt)           # (C, 2C)
    wpt = wp.T.astype(cdt)                                             # (C, C)
    bq2 = bq.reshape(1, C).astype(jnp.float32)
    bkv2 = jnp.concatenate([bk, bv]).reshape(1, 2 * C).astype(jnp.float32)
    bp2 = bp.reshape(1, C).astype(jnp.float32)

    kernel = functools.partial(_mhsa_kernel, n_heads=n_heads, use_mask=use_mask)
    const = lambda b, qi, ki: (0, 0)

    grid = (B, T // q_tile, T // kv_tile)
    in_specs = [
        pl.BlockSpec((1, q_tile, C), lambda b, qi, ki: (b, qi, 0)),    # x (q rows)
        pl.BlockSpec((1, kv_tile, C), lambda b, qi, ki: (b, ki, 0)),   # x (kv rows)
        pl.BlockSpec((C, C), const),          # Wq.T           (resident)
        pl.BlockSpec((1, C), const),          # bq
        pl.BlockSpec((C, 2 * C), const),      # [Wk.T | Wv.T]  (resident)
        pl.BlockSpec((1, 2 * C), const),      # [bk | bv]
        pl.BlockSpec((C, C), const),          # Wproj.T        (resident)
        pl.BlockSpec((1, C), const),          # bproj
    ]
    out_spec = pl.BlockSpec((1, q_tile, C), lambda b, qi, ki: (b, qi, 0))

    scratch = [
        pltpu.VMEM((q_tile, C), cdt),                  # q tile (pre-scaled)
        pltpu.VMEM((q_tile, n_heads), jnp.float32),    # running max per head
        pltpu.VMEM((q_tile, n_heads), jnp.float32),    # running denom per head
        pltpu.VMEM((q_tile, C), jnp.float32),          # per-head outputs (slots)
    ]

    return pl.pallas_call(
        kernel,
        out_shape=jax.ShapeDtypeStruct((B, T, C), out_dtype),
        grid_spec=pltpu.PrefetchScalarGridSpec(
            num_scalar_prefetch=0,
            grid=grid,
            in_specs=in_specs,
            out_specs=out_spec,
            scratch_shapes=scratch,
        ),
        compiler_params=pltpu.CompilerParams(
            dimension_semantics=("parallel", "parallel", "arbitrary"),
            vmem_limit_bytes=vmem_limit_bytes,
        ),
    )(x, x, wqt, bq2, wkvt, bkv2, wpt, bp2)


def _reference(x, wq, wk, wv, wp, bq, bk, bv, bp, *, n_heads, use_mask=True):
    """Pure-JAX f32 reference mirroring the PyTorch forward (eval mode)."""
    B, T, C = x.shape
    hd = C // n_heads
    q = x @ wq.T + bq
    k = x @ wk.T + bk
    v = x @ wv.T + bv
    q = q.reshape(B, T, n_heads, hd).transpose(0, 2, 1, 3)
    k = k.reshape(B, T, n_heads, hd).transpose(0, 2, 1, 3)
    v = v.reshape(B, T, n_heads, hd).transpose(0, 2, 1, 3)
    att = jnp.einsum("bhtd,bhsd->bhts", q, k) / math.sqrt(hd)
    if use_mask:
        mask = jnp.tril(jnp.ones((T, T), dtype=bool))
        att = jnp.where(mask[None, None], att, -jnp.inf)
    att = jax.nn.softmax(att, axis=-1)
    y = jnp.einsum("bhts,bhsd->bhtd", att, v)
    y = y.transpose(0, 2, 1, 3).reshape(B, T, C)
    return y @ wp.T + bp


if __name__ == "__main__":
    def make_params(key, C):
        ks = jax.random.split(key, 8)
        s = 1.0 / math.sqrt(C)
        wq = jax.random.normal(ks[0], (C, C), jnp.float32) * s
        wk = jax.random.normal(ks[1], (C, C), jnp.float32) * s
        wv = jax.random.normal(ks[2], (C, C), jnp.float32) * s
        wp = jax.random.normal(ks[3], (C, C), jnp.float32) * s
        bq = jax.random.normal(ks[4], (C,), jnp.float32) * 0.01
        bk = jax.random.normal(ks[5], (C,), jnp.float32) * 0.01
        bv = jax.random.normal(ks[6], (C,), jnp.float32) * 0.01
        bp = jax.random.normal(ks[7], (C,), jnp.float32) * 0.01
        return wq, wk, wv, wp, bq, bk, bv, bp

    key = jax.random.PRNGKey(0)

    # Config A: module-scale smoke test (single q/kv tile), causal + non-causal.
    kx, kp, key = jax.random.split(key, 3)
    B, T, C, H = 2, 8, 32, 4
    x = jax.random.normal(kx, (B, T, C), jnp.float32)
    params = make_params(kp, C)

    out = jax.block_until_ready(
        multi_head_self_attention(x, *params, n_heads=H, use_mask=True))
    ref = _reference(x, *params, n_heads=H, use_mask=True)
    np.testing.assert_allclose(np.asarray(out), np.asarray(ref),
                               atol=5e-2, rtol=5e-2)

    out_nm = jax.block_until_ready(
        multi_head_self_attention(x, *params, n_heads=H, use_mask=False))
    ref_nm = _reference(x, *params, n_heads=H, use_mask=False)
    np.testing.assert_allclose(np.asarray(out_nm), np.asarray(ref_nm),
                               atol=5e-2, rtol=5e-2)

    # Config B: multiple q/kv tiles -> exercises the online softmax, causal
    # block skipping and the cross-kv-step accumulator path.
    kx, kp, key = jax.random.split(key, 3)
    B, T, C, H = 2, 64, 128, 4
    x = jax.random.normal(kx, (B, T, C), jnp.float32)
    params = make_params(kp, C)
    out = jax.block_until_ready(
        multi_head_self_attention(x, *params, n_heads=H, use_mask=True,
                                  q_tile=16, kv_tile=16))
    ref = _reference(x, *params, n_heads=H, use_mask=True)
    np.testing.assert_allclose(np.asarray(out), np.asarray(ref),
                               atol=5e-2, rtol=5e-2)

    print("KERNEL_OK")
</pallas_src>

<mosaic_0001>
module attributes {stable_mosaic.version = 11 : i64} {
  func.func @_mhsa_kernel(%arg0: i32, %arg1: i32, %arg2: i32, %arg3: memref<1x8x32xf32, #tpu.memory_space<vmem>>, %arg4: memref<1x8x32xf32, #tpu.memory_space<vmem>>, %arg5: memref<32x32xbf16, #tpu.memory_space<vmem>>, %arg6: memref<1x32xf32, #tpu.memory_space<vmem>>, %arg7: memref<32x64xbf16, #tpu.memory_space<vmem>>, %arg8: memref<1x64xf32, #tpu.memory_space<vmem>>, %arg9: memref<32x32xbf16, #tpu.memory_space<vmem>>, %arg10: memref<1x32xf32, #tpu.memory_space<vmem>>, %arg11: memref<1x8x32xf32, #tpu.memory_space<vmem>>, %arg12: memref<8x32xbf16, #tpu.memory_space<vmem>>, %arg13: memref<8x4xf32, #tpu.memory_space<vmem>>, %arg14: memref<8x4xf32, #tpu.memory_space<vmem>>, %arg15: memref<8x32xf32, #tpu.memory_space<vmem>>) attributes {dimension_semantics = [#tpu.dimension_semantics<parallel>, #tpu.dimension_semantics<parallel>, #tpu.dimension_semantics<arbitrary>], iteration_bounds = array<i64: 2, 1, 1>, scalar_prefetch = 0 : i64, scratch_operands = 4 : i64, tpu.core_type = #tpu.core_type<tc>, window_params = [{transform_indices = @transform_0, window_bounds = array<i64: 1, 8, 32>}, {transform_indices = @transform_1, window_bounds = array<i64: 1, 8, 32>}, {pipeline_mode = #tpu.pipeline_mode<synchronous>, transform_indices = @transform_2, window_bounds = array<i64: 32, 32>}, {pipeline_mode = #tpu.pipeline_mode<synchronous>, transform_indices = @transform_3, window_bounds = array<i64: 1, 32>}, {pipeline_mode = #tpu.pipeline_mode<synchronous>, transform_indices = @transform_4, window_bounds = array<i64: 32, 64>}, {pipeline_mode = #tpu.pipeline_mode<synchronous>, transform_indices = @transform_5, window_bounds = array<i64: 1, 64>}, {pipeline_mode = #tpu.pipeline_mode<synchronous>, transform_indices = @transform_6, window_bounds = array<i64: 32, 32>}, {pipeline_mode = #tpu.pipeline_mode<synchronous>, transform_indices = @transform_7, window_bounds = array<i64: 1, 32>}, {transform_indices = @transform_8, window_bounds = array<i64: 1, 8, 32>}]} {
    %c0_i32 = arith.constant 0 : i32
    %0 = arith.cmpi eq, %arg2, %c0_i32 : i32
    %1 = arith.extui %0 : i1 to i32
    %c0_i32_0 = arith.constant 0 : i32
    %2 = arith.cmpi ne, %1, %c0_i32_0 : i32
    scf.if %2 {
      %c0 = arith.constant 0 : index
      %c0_6 = arith.constant 0 : index
      %c0_7 = arith.constant 0 : index
      %14 = vector.load %arg4[%c0, %c0_6, %c0_7] : memref<1x8x32xf32, #tpu.memory_space<vmem>>, vector<1x8x32xf32>
      %15 = vector.shape_cast %14 : vector<1x8x32xf32> to vector<8x32xf32>
      %16 = arith.truncf %15 : vector<8x32xf32> to vector<8x32xbf16>
      %c0_8 = arith.constant 0 : index
      %c0_9 = arith.constant 0 : index
      %17 = vector.load %arg7[%c0_8, %c0_9] : memref<32x64xbf16, #tpu.memory_space<vmem>>, vector<32x64xbf16>
      %cst = arith.constant dense<0.000000e+00> : vector<8x64xf32>
      %18 = tpu.matmul %16, %17, %cst {dimension_numbers = #tpu.dot_dimension_numbers<[1], [0], [0], [1], [0, 0, 1, 1], [], []>} : vector<8x32xbf16>, vector<32x64xbf16>, vector<8x64xf32> -> vector<8x64xf32>
      %c0_10 = arith.constant 0 : index
      %c0_11 = arith.constant 0 : index
      %19 = vector.load %arg8[%c0_10, %c0_11] : memref<1x64xf32, #tpu.memory_space<vmem>>, vector<1x64xf32>
      %20 = vector.broadcast %19 : vector<1x64xf32> to vector<8x64xf32>
      %21 = arith.addf %18, %20 : vector<8x64xf32>
      %22 = arith.truncf %21 : vector<8x64xf32> to vector<8x64xbf16>
      %23 = tpu.iota {dimensions = array<i32: 0>} : vector<8x8xi32>
      %c8_i32_12 = arith.constant 8 : i32
      %24 = arith.muli %arg1, %c8_i32_12 : i32
      %25 = vector.broadcast %24 : i32 to vector<8x8xi32>
      %26 = arith.addi %23, %25 : vector<8x8xi32>
      %27 = tpu.iota {dimensions = array<i32: 1>} : vector<8x8xi32>
      %c8_i32_13 = arith.constant 8 : i32
      %28 = arith.muli %arg2, %c8_i32_13 : i32
      %29 = vector.broadcast %28 : i32 to vector<8x8xi32>
      %30 = arith.addi %27, %29 : vector<8x8xi32>
      %31 = arith.cmpi sle, %30, %26 : vector<8x8xi32>
      %c0_14 = arith.constant 0 : index
      %c0_15 = arith.constant 0 : index
      %c0_16 = arith.constant 0 : index
      %32 = vector.load %arg3[%c0_14, %c0_15, %c0_16] : memref<1x8x32xf32, #tpu.memory_space<vmem>>, vector<1x8x32xf32>
      %33 = vector.shape_cast %32 : vector<1x8x32xf32> to vector<8x32xf32>
      %34 = arith.truncf %33 : vector<8x32xf32> to vector<8x32xbf16>
      %c0_17 = arith.constant 0 : index
      %c0_18 = arith.constant 0 : index
      %35 = vector.load %arg5[%c0_17, %c0_18] : memref<32x32xbf16, #tpu.memory_space<vmem>>, vector<32x32xbf16>
      %cst_19 = arith.constant dense<0.000000e+00> : vector<8x32xf32>
      %36 = tpu.matmul %34, %35, %cst_19 {dimension_numbers = #tpu.dot_dimension_numbers<[1], [0], [0], [1], [0, 0, 1, 1], [], []>} : vector<8x32xbf16>, vector<32x32xbf16>, vector<8x32xf32> -> vector<8x32xf32>
      %c0_20 = arith.constant 0 : index
      %c0_21 = arith.constant 0 : index
      %37 = vector.load %arg6[%c0_20, %c0_21] : memref<1x32xf32, #tpu.memory_space<vmem>>, vector<1x32xf32>
      %38 = vector.broadcast %37 : vector<1x32xf32> to vector<8x32xf32>
      %39 = arith.addf %36, %38 : vector<8x32xf32>
      %cst_22 = arith.constant 0.353553385 : f32
      %40 = vector.broadcast %cst_22 : f32 to vector<8x32xf32>
      %41 = arith.mulf %39, %40 : vector<8x32xf32>
      %42 = arith.truncf %41 : vector<8x32xf32> to vector<8x32xbf16>
      %c0_23 = arith.constant 0 : index
      %c0_24 = arith.constant 0 : index
      %43 = vector.load %arg12[%c0_23, %c0_24] : memref<8x32xbf16, #tpu.memory_space<vmem>>, vector<8x32xbf16>
      tpu.vector_store %arg12[%c0_23, %c0_24], %42 {strides = array<i32>} : memref<8x32xbf16, #tpu.memory_space<vmem>>, vector<8x32xbf16>,
      %44 = vector.extract_strided_slice %42 {offsets = [0, 0], sizes = [8, 8], strides = [1, 1]} : vector<8x32xbf16> to vector<8x8xbf16>
      %45 = vector.extract_strided_slice %22 {offsets = [0, 0], sizes = [8, 8], strides = [1, 1]} : vector<8x64xbf16> to vector<8x8xbf16>
      %46 = vector.extract_strided_slice %22 {offsets = [0, 32], sizes = [8, 8], strides = [1, 1]} : vector<8x64xbf16> to vector<8x8xbf16>
      %cst_25 = arith.constant dense<0.000000e+00> : vector<8x8xf32>
      %47 = tpu.matmul %44, %45, %cst_25 {dimension_numbers = #tpu.dot_dimension_numbers<[1], [1], [0], [0], [0, 0, 1, 0], [], []>} : vector<8x8xbf16>, vector<8x8xbf16>, vector<8x8xf32> -> vector<8x8xf32>
      %cst_26 = arith.constant 0xFF800000 : f32
      %48 = vector.broadcast %cst_26 : f32 to vector<8x8xf32>
      %49 = arith.select %31, %47, %48 : vector<8x8xi1>, vector<8x8xf32>
      %cst_27 = arith.constant dense<0xFF800000> : vector<8xf32>
      %50 = vector.multi_reduction <maximumf>, %49, %cst_27 [1] : vector<8x8xf32> to vector<8xf32>
      %51 = vector.shape_cast %50 : vector<8xf32> to vector<8x1xf32>
      %52 = vector.broadcast %51 : vector<8x1xf32> to vector<8x8xf32>
      %53 = arith.subf %49, %52 : vector<8x8xf32>
      %54 = math.exp %53 : vector<8x8xf32>
      %c0_28 = arith.constant 0 : index
      %c0_29 = arith.constant 0 : index
      %55 = vector.load %arg13[%c0_28, %c0_29] : memref<8x4xf32, #tpu.memory_space<vmem>>, vector<8x1xf32>
      tpu.vector_store %arg13[%c0_28, %c0_29], %51 {strides = array<i32>} : memref<8x4xf32, #tpu.memory_space<vmem>>, vector<8x1xf32>,
      %cst_30 = arith.constant dense<0.000000e+00> : vector<8xf32>
      %56 = vector.multi_reduction <add>, %54, %cst_30 [1] : vector<8x8xf32> to vector<8xf32>
      %57 = vector.shape_cast %56 : vector<8xf32> to vector<8x1xf32>
      %c0_31 = arith.constant 0 : index
      %c0_32 = arith.constant 0 : index
      %58 = vector.load %arg14[%c0_31, %c0_32] : memref<8x4xf32, #tpu.memory_space<vmem>>, vector<8x1xf32>
      tpu.vector_store %arg14[%c0_31, %c0_32], %57 {strides = array<i32>} : memref<8x4xf32, #tpu.memory_space<vmem>>, vector<8x1xf32>,
      %59 = arith.truncf %54 : vector<8x8xf32> to vector<8x8xbf16>
      %cst_33 = arith.constant dense<0.000000e+00> : vector<8x8xf32>
      %60 = tpu.matmul %59, %46, %cst_33 {dimension_numbers = #tpu.dot_dimension_numbers<[1], [0], [0], [1], [0, 0, 1, 1], [], []>} : vector<8x8xbf16>, vector<8x8xbf16>, vector<8x8xf32> -> vector<8x8xf32>
      %c0_34 = arith.constant 0 : index
      %c0_35 = arith.constant 0 : index
      %61 = vector.load %arg15[%c0_34, %c0_35] : memref<8x32xf32, #tpu.memory_space<vmem>>, vector<8x8xf32>
      tpu.vector_store %arg15[%c0_34, %c0_35], %60 {strides = array<i32>} : memref<8x32xf32, #tpu.memory_space<vmem>>, vector<8x8xf32>,
      %62 = vector.extract_strided_slice %42 {offsets = [0, 8], sizes = [8, 8], strides = [1, 1]} : vector<8x32xbf16> to vector<8x8xbf16>
      %63 = vector.extract_strided_slice %22 {offsets = [0, 8], sizes = [8, 8], strides = [1, 1]} : vector<8x64xbf16> to vector<8x8xbf16>
      %64 = vector.extract_strided_slice %22 {offsets = [0, 40], sizes = [8, 8], strides = [1, 1]} : vector<8x64xbf16> to vector<8x8xbf16>
      %cst_36 = arith.constant dense<0.000000e+00> : vector<8x8xf32>
      %65 = tpu.matmul %62, %63, %cst_36 {dimension_numbers = #tpu.dot_dimension_numbers<[1], [1], [0], [0], [0, 0, 1, 0], [], []>} : vector<8x8xbf16>, vector<8x8xbf16>, vector<8x8xf32> -> vector<8x8xf32>
      %cst_37 = arith.constant 0xFF800000 : f32
      %66 = vector.broadcast %cst_37 : f32 to vector<8x8xf32>
      %67 = arith.select %31, %65, %66 : vector<8x8xi1>, vector<8x8xf32>
      %cst_38 = arith.constant dense<0xFF800000> : vector<8xf32>
      %68 = vector.multi_reduction <maximumf>, %67, %cst_38 [1] : vector<8x8xf32> to vector<8xf32>
      %69 = vector.shape_cast %68 : vector<8xf32> to vector<8x1xf32>
      %70 = vector.broadcast %69 : vector<8x1xf32> to vector<8x8xf32>
      %71 = arith.subf %67, %70 : vector<8x8xf32>
      %72 = math.exp %71 : vector<8x8xf32>
      %c0_39 = arith.constant 0 : index
      %c1 = arith.constant 1 : index
      %73 = vector.load %arg13[%c0_39, %c1] : memref<8x4xf32, #tpu.memory_space<vmem>>, vector<8x1xf32>
      tpu.vector_store %arg13[%c0_39, %c1], %69 {strides = array<i32>} : memref<8x4xf32, #tpu.memory_space<vmem>>, vector<8x1xf32>,
      %cst_40 = arith.constant dense<0.000000e+00> : vector<8xf32>
      %74 = vector.multi_reduction <add>, %72, %cst_40 [1] : vector<8x8xf32> to vector<8xf32>
      %75 = vector.shape_cast %74 : vector<8xf32> to vector<8x1xf32>
      %c0_41 = arith.constant 0 : index
      %c1_42 = arith.constant 1 : index
      %76 = vector.load %arg14[%c0_41, %c1_42] : memref<8x4xf32, #tpu.memory_space<vmem>>, vector<8x1xf32>
      tpu.vector_store %arg14[%c0_41, %c1_42], %75 {strides = array<i32>} : memref<8x4xf32, #tpu.memory_space<vmem>>, vector<8x1xf32>,
      %77 = arith.truncf %72 : vector<8x8xf32> to vector<8x8xbf16>
      %cst_43 = arith.constant dense<0.000000e+00> : vector<8x8xf32>
      %78 = tpu.matmul %77, %64, %cst_43 {dimension_numbers = #tpu.dot_dimension_numbers<[1], [0], [0], [1], [0, 0, 1, 1], [], []>} : vector<8x8xbf16>, vector<8x8xbf16>, vector<8x8xf32> -> vector<8x8xf32>
      %c0_44 = arith.constant 0 : index
      %c8 = arith.constant 8 : index
      %79 = vector.load %arg15[%c0_44, %c8] : memref<8x32xf32, #tpu.memory_space<vmem>>, vector<8x8xf32>
      tpu.vector_store %arg15[%c0_44, %c8], %78 {strides = array<i32>} : memref<8x32xf32, #tpu.memory_space<vmem>>, vector<8x8xf32>,
      %80 = vector.extract_strided_slice %42 {offsets = [0, 16], sizes = [8, 8], strides = [1, 1]} : vector<8x32xbf16> to vector<8x8xbf16>
      %81 = vector.extract_strided_slice %22 {offsets = [0, 16], sizes = [8, 8], strides = [1, 1]} : vector<8x64xbf16> to vector<8x8xbf16>
      %82 = vector.extract_strided_slice %22 {offsets = [0, 48], sizes = [8, 8], strides = [1, 1]} : vector<8x64xbf16> to vector<8x8xbf16>
      %cst_45 = arith.constant dense<0.000000e+00> : vector<8x8xf32>
      %83 = tpu.matmul %80, %81, %cst_45 {dimension_numbers = #tpu.dot_dimension_numbers<[1], [1], [0], [0], [0, 0, 1, 0], [], []>} : vector<8x8xbf16>, vector<8x8xbf16>, vector<8x8xf32> -> vector<8x8xf32>
      %cst_46 = arith.constant 0xFF800000 : f32
      %84 = vector.broadcast %cst_46 : f32 to vector<8x8xf32>
      %85 = arith.select %31, %83, %84 : vector<8x8xi1>, vector<8x8xf32>
      %cst_47 = arith.constant dense<0xFF800000> : vector<8xf32>
      %86 = vector.multi_reduction <maximumf>, %85, %cst_47 [1] : vector<8x8xf32> to vector<8xf32>
      %87 = vector.shape_cast %86 : vector<8xf32> to vector<8x1xf32>
      %88 = vector.broadcast %87 : vector<8x1xf32> to vector<8x8xf32>
      %89 = arith.subf %85, %88 : vector<8x8xf32>
      %90 = math.exp %89 : vector<8x8xf32>
      %c0_48 = arith.constant 0 : index
      %c2 = arith.constant 2 : index
      %91 = vector.load %arg13[%c0_48, %c2] : memref<8x4xf32, #tpu.memory_space<vmem>>, vector<8x1xf32>
      tpu.vector_store %arg13[%c0_48, %c2], %87 {strides = array<i32>} : memref<8x4xf32, #tpu.memory_space<vmem>>, vector<8x1xf32>,
      %cst_49 = arith.constant dense<0.000000e+00> : vector<8xf32>
      %92 = vector.multi_reduction <add>, %90, %cst_49 [1] : vector<8x8xf32> to vector<8xf32>
      %93 = vector.shape_cast %92 : vector<8xf32> to vector<8x1xf32>
      %c0_50 = arith.constant 0 : index
      %c2_51 = arith.constant 2 : index
      %94 = vector.load %arg14[%c0_50, %c2_51] : memref<8x4xf32, #tpu.memory_space<vmem>>, vector<8x1xf32>
      tpu.vector_store %arg14[%c0_50, %c2_51], %93 {strides = array<i32>} : memref<8x4xf32, #tpu.memory_space<vmem>>, vector<8x1xf32>,
      %95 = arith.truncf %90 : vector<8x8xf32> to vector<8x8xbf16>
      %cst_52 = arith.constant dense<0.000000e+00> : vector<8x8xf32>
      %96 = tpu.matmul %95, %82, %cst_52 {dimension_numbers = #tpu.dot_dimension_numbers<[1], [0], [0], [1], [0, 0, 1, 1], [], []>} : vector<8x8xbf16>, vector<8x8xbf16>, vector<8x8xf32> -> vector<8x8xf32>
      %c0_53 = arith.constant 0 : index
      %c16 = arith.constant 16 : index
      %97 = vector.load %arg15[%c0_53, %c16] : memref<8x32xf32, #tpu.memory_space<vmem>>, vector<8x8xf32>
      tpu.vector_store %arg15[%c0_53, %c16], %96 {strides = array<i32>} : memref<8x32xf32, #tpu.memory_space<vmem>>, vector<8x8xf32>,
      %98 = vector.extract_strided_slice %42 {offsets = [0, 24], sizes = [8, 8], strides = [1, 1]} : vector<8x32xbf16> to vector<8x8xbf16>
      %99 = vector.extract_strided_slice %22 {offsets = [0, 24], sizes = [8, 8], strides = [1, 1]} : vector<8x64xbf16> to vector<8x8xbf16>
      %100 = vector.extract_strided_slice %22 {offsets = [0, 56], sizes = [8, 8], strides = [1, 1]} : vector<8x64xbf16> to vector<8x8xbf16>
      %cst_54 = arith.constant dense<0.000000e+00> : vector<8x8xf32>
      %101 = tpu.matmul %98, %99, %cst_54 {dimension_numbers = #tpu.dot_dimension_numbers<[1], [1], [0], [0], [0, 0, 1, 0], [], []>} : vector<8x8xbf16>, vector<8x8xbf16>, vector<8x8xf32> -> vector<8x8xf32>
      %cst_55 = arith.constant 0xFF800000 : f32
      %102 = vector.broadcast %cst_55 : f32 to vector<8x8xf32>
      %103 = arith.select %31, %101, %102 : vector<8x8xi1>, vector<8x8xf32>
      %cst_56 = arith.constant dense<0xFF800000> : vector<8xf32>
      %104 = vector.multi_reduction <maximumf>, %103, %cst_56 [1] : vector<8x8xf32> to vector<8xf32>
      %105 = vector.shape_cast %104 : vector<8xf32> to vector<8x1xf32>
      %106 = vector.broadcast %105 : vector<8x1xf32> to vector<8x8xf32>
      %107 = arith.subf %103, %106 : vector<8x8xf32>
      %108 = math.exp %107 : vector<8x8xf32>
      %c0_57 = arith.constant 0 : index
      %c3 = arith.constant 3 : index
      %109 = vector.load %arg13[%c0_57, %c3] : memref<8x4xf32, #tpu.memory_space<vmem>>, vector<8x1xf32>
      tpu.vector_store %arg13[%c0_57, %c3], %105 {strides = array<i32>} : memref<8x4xf32, #tpu.memory_space<vmem>>, vector<8x1xf32>,
      %cst_58 = arith.constant dense<0.000000e+00> : vector<8xf32>
      %110 = vector.multi_reduction <add>, %108, %cst_58 [1] : vector<8x8xf32> to vector<8xf32>
      %111 = vector.shape_cast %110 : vector<8xf32> to vector<8x1xf32>
      %c0_59 = arith.constant 0 : index
      %c3_60 = arith.constant 3 : index
      %112 = vector.load %arg14[%c0_59, %c3_60] : memref<8x4xf32, #tpu.memory_space<vmem>>, vector<8x1xf32>
      tpu.vector_store %arg14[%c0_59, %c3_60], %111 {strides = array<i32>} : memref<8x4xf32, #tpu.memory_space<vmem>>, vector<8x1xf32>,
      %113 = arith.truncf %108 : vector<8x8xf32> to vector<8x8xbf16>
      %cst_61 = arith.constant dense<0.000000e+00> : vector<8x8xf32>
      %114 = tpu.matmul %113, %100, %cst_61 {dimension_numbers = #tpu.dot_dimension_numbers<[1], [0], [0], [1], [0, 0, 1, 1], [], []>} : vector<8x8xbf16>, vector<8x8xbf16>, vector<8x8xf32> -> vector<8x8xf32>
      %c0_62 = arith.constant 0 : index
      %c24 = arith.constant 24 : index
      %115 = vector.load %arg15[%c0_62, %c24] : memref<8x32xf32, #tpu.memory_space<vmem>>, vector<8x8xf32>
      tpu.vector_store %arg15[%c0_62, %c24], %114 {strides = array<i32>} : memref<8x32xf32, #tpu.memory_space<vmem>>, vector<8x8xf32>,
    } else {
    }
    %c0_i32_1 = arith.constant 0 : i32
    %3 = arith.cmpi sgt, %arg2, %c0_i32_1 : i32
    %c8_i32 = arith.constant 8 : i32
    %4 = arith.muli %arg2, %c8_i32 : i32
    %c8_i32_2 = arith.constant 8 : i32
    %5 = arith.muli %arg1, %c8_i32_2 : i32
    %c7_i32 = arith.constant 7 : i32
    %6 = arith.addi %5, %c7_i32 : i32
    %7 = arith.cmpi sle, %4, %6 : i32
    %8 = arith.andi %3, %7 : i1
    %9 = arith.extui %8 : i1 to i32
    %c0_i32_3 = arith.constant 0 : i32
    %10 = arith.cmpi ne, %9, %c0_i32_3 : i32
    scf.if %10 {
      %c0 = arith.constant 0 : index
      %c0_6 = arith.constant 0 : index
      %c0_7 = arith.constant 0 : index
      %14 = vector.load %arg4[%c0, %c0_6, %c0_7] : memref<1x8x32xf32, #tpu.memory_space<vmem>>, vector<1x8x32xf32>
      %15 = vector.shape_cast %14 : vector<1x8x32xf32> to vector<8x32xf32>
      %16 = arith.truncf %15 : vector<8x32xf32> to vector<8x32xbf16>
      %c0_8 = arith.constant 0 : index
      %c0_9 = arith.constant 0 : index
      %17 = vector.load %arg7[%c0_8, %c0_9] : memref<32x64xbf16, #tpu.memory_space<vmem>>, vector<32x64xbf16>
      %cst = arith.constant dense<0.000000e+00> : vector<8x64xf32>
      %18 = tpu.matmul %16, %17, %cst {dimension_numbers = #tpu.dot_dimension_numbers<[1], [0], [0], [1], [0, 0, 1, 1], [], []>} : vector<8x32xbf16>, vector<32x64xbf16>, vector<8x64xf32> -> vector<8x64xf32>
      %c0_10 = arith.constant 0 : index
      %c0_11 = arith.constant 0 : index
      %19 = vector.load %arg8[%c0_10, %c0_11] : memref<1x64xf32, #tpu.memory_space<vmem>>, vector<1x64xf32>
      %20 = vector.broadcast %19 : vector<1x64xf32> to vector<8x64xf32>
      %21 = arith.addf %18, %20 : vector<8x64xf32>
      %22 = arith.truncf %21 : vector<8x64xf32> to vector<8x64xbf16>
      %23 = tpu.iota {dimensions = array<i32: 0>} : vector<8x8xi32>
      %c8_i32_12 = arith.constant 8 : i32
      %24 = arith.muli %arg1, %c8_i32_12 : i32
      %25 = vector.broadcast %24 : i32 to vector<8x8xi32>
      %26 = arith.addi %23, %25 : vector<8x8xi32>
      %27 = tpu.iota {dimensions = array<i32: 1>} : vector<8x8xi32>
      %c8_i32_13 = arith.constant 8 : i32
      %28 = arith.muli %arg2, %c8_i32_13 : i32
      %29 = vector.broadcast %28 : i32 to vector<8x8xi32>
      %30 = arith.addi %27, %29 : vector<8x8xi32>
      %31 = arith.cmpi sle, %30, %26 : vector<8x8xi32>
      %c0_14 = arith.constant 0 : index
      %c0_15 = arith.constant 0 : index
      %32 = vector.load %arg12[%c0_14, %c0_15] : memref<8x32xbf16, #tpu.memory_space<vmem>>, vector<8x32xbf16>
      %33 = vector.extract_strided_slice %32 {offsets = [0, 0], sizes = [8, 8], strides = [1, 1]} : vector<8x32xbf16> to vector<8x8xbf16>
      %34 = vector.extract_strided_slice %22 {offsets = [0, 0], sizes = [8, 8], strides = [1, 1]} : vector<8x64xbf16> to vector<8x8xbf16>
      %35 = vector.extract_strided_slice %22 {offsets = [0, 32], sizes = [8, 8], strides = [1, 1]} : vector<8x64xbf16> to vector<8x8xbf16>
      %cst_16 = arith.constant dense<0.000000e+00> : vector<8x8xf32>
      %36 = tpu.matmul %33, %34, %cst_16 {dimension_numbers = #tpu.dot_dimension_numbers<[1], [1], [0], [0], [0, 0, 1, 0], [], []>} : vector<8x8xbf16>, vector<8x8xbf16>, vector<8x8xf32> -> vector<8x8xf32>
      %cst_17 = arith.constant 0xFF800000 : f32
      %37 = vector.broadcast %cst_17 : f32 to vector<8x8xf32>
      %38 = arith.select %31, %36, %37 : vector<8x8xi1>, vector<8x8xf32>
      %cst_18 = arith.constant dense<0xFF800000> : vector<8xf32>
      %39 = vector.multi_reduction <maximumf>, %38, %cst_18 [1] : vector<8x8xf32> to vector<8xf32>
      %40 = vector.shape_cast %39 : vector<8xf32> to vector<8x1xf32>
      %c0_19 = arith.constant 0 : index
      %c0_20 = arith.constant 0 : index
      %41 = vector.load %arg13[%c0_19, %c0_20] : memref<8x4xf32, #tpu.memory_space<vmem>>, vector<8x1xf32>
      %42 = arith.maximumf %41, %40 : vector<8x1xf32>
      %43 = arith.subf %41, %42 : vector<8x1xf32>
      %44 = math.exp %43 : vector<8x1xf32>
      %45 = vector.broadcast %42 : vector<8x1xf32> to vector<8x8xf32>
      %46 = arith.subf %38, %45 : vector<8x8xf32>
      %47 = math.exp %46 : vector<8x8xf32>
      %c0_21 = arith.constant 0 : index
      %c0_22 = arith.constant 0 : index
      %48 = vector.load %arg14[%c0_21, %c0_22] : memref<8x4xf32, #tpu.memory_space<vmem>>, vector<8x1xf32>
      %49 = arith.mulf %44, %48 : vector<8x1xf32>
      %cst_23 = arith.constant dense<0.000000e+00> : vector<8xf32>
      %50 = vector.multi_reduction <add>, %47, %cst_23 [1] : vector<8x8xf32> to vector<8xf32>
      %51 = vector.shape_cast %50 : vector<8xf32> to vector<8x1xf32>
      %52 = arith.addf %49, %51 : vector<8x1xf32>
      %c0_24 = arith.constant 0 : index
      %c0_25 = arith.constant 0 : index
      %53 = vector.load %arg14[%c0_24, %c0_25] : memref<8x4xf32, #tpu.memory_space<vmem>>, vector<8x1xf32>
      tpu.vector_store %arg14[%c0_24, %c0_25], %52 {strides = array<i32>} : memref<8x4xf32, #tpu.memory_space<vmem>>, vector<8x1xf32>,
      %c0_26 = arith.constant 0 : index
      %c0_27 = arith.constant 0 : index
      %54 = vector.load %arg15[%c0_26, %c0_27] : memref<8x32xf32, #tpu.memory_space<vmem>>, vector<8x8xf32>
      %55 = vector.broadcast %44 : vector<8x1xf32> to vector<8x8xf32>
      %56 = arith.mulf %55, %54 : vector<8x8xf32>
      %57 = arith.truncf %47 : vector<8x8xf32> to vector<8x8xbf16>
      %cst_28 = arith.constant dense<0.000000e+00> : vector<8x8xf32>
      %58 = tpu.matmul %57, %35, %cst_28 {dimension_numbers = #tpu.dot_dimension_numbers<[1], [0], [0], [1], [0, 0, 1, 1], [], []>} : vector<8x8xbf16>, vector<8x8xbf16>, vector<8x8xf32> -> vector<8x8xf32>
      %59 = arith.addf %56, %58 : vector<8x8xf32>
      %c0_29 = arith.constant 0 : index
      %c0_30 = arith.constant 0 : index
      %60 = vector.load %arg15[%c0_29, %c0_30] : memref<8x32xf32, #tpu.memory_space<vmem>>, vector<8x8xf32>
      tpu.vector_store %arg15[%c0_29, %c0_30], %59 {strides = array<i32>} : memref<8x32xf32, #tpu.memory_space<vmem>>, vector<8x8xf32>,
      %c0_31 = arith.constant 0 : index
      %c0_32 = arith.constant 0 : index
      %61 = vector.load %arg13[%c0_31, %c0_32] : memref<8x4xf32, #tpu.memory_space<vmem>>, vector<8x1xf32>
      tpu.vector_store %arg13[%c0_31, %c0_32], %42 {strides = array<i32>} : memref<8x4xf32, #tpu.memory_space<vmem>>, vector<8x1xf32>,
      %62 = vector.extract_strided_slice %32 {offsets = [0, 8], sizes = [8, 8], strides = [1, 1]} : vector<8x32xbf16> to vector<8x8xbf16>
      %63 = vector.extract_strided_slice %22 {offsets = [0, 8], sizes = [8, 8], strides = [1, 1]} : vector<8x64xbf16> to vector<8x8xbf16>
      %64 = vector.extract_strided_slice %22 {offsets = [0, 40], sizes = [8, 8], strides = [1, 1]} : vector<8x64xbf16> to vector<8x8xbf16>
      %cst_33 = arith.constant dense<0.000000e+00> : vector<8x8xf32>
      %65 = tpu.matmul %62, %63, %cst_33 {dimension_numbers = #tpu.dot_dimension_numbers<[1], [1], [0], [0], [0, 0, 1, 0], [], []>} : vector<8x8xbf16>, vector<8x8xbf16>, vector<8x8xf32> -> vector<8x8xf32>
      %cst_34 = arith.constant 0xFF800000 : f32
      %66 = vector.broadcast %cst_34 : f32 to vector<8x8xf32>
      %67 = arith.select %31, %65, %66 : vector<8x8xi1>, vector<8x8xf32>
      %cst_35 = arith.constant dense<0xFF800000> : vector<8xf32>
      %68 = vector.multi_reduction <maximumf>, %67, %cst_35 [1] : vector<8x8xf32> to vector<8xf32>
      %69 = vector.shape_cast %68 : vector<8xf32> to vector<8x1xf32>
      %c0_36 = arith.constant 0 : index
      %c1 = arith.constant 1 : index
      %70 = vector.load %arg13[%c0_36, %c1] : memref<8x4xf32, #tpu.memory_space<vmem>>, vector<8x1xf32>
      %71 = arith.maximumf %70, %69 : vector<8x1xf32>
      %72 = arith.subf %70, %71 : vector<8x1xf32>
      %73 = math.exp %72 : vector<8x1xf32>
      %74 = vector.broadcast %71 : vector<8x1xf32> to vector<8x8xf32>
      %75 = arith.subf %67, %74 : vector<8x8xf32>
      %76 = math.exp %75 : vector<8x8xf32>
      %c0_37 = arith.constant 0 : index
      %c1_38 = arith.constant 1 : index
      %77 = vector.load %arg14[%c0_37, %c1_38] : memref<8x4xf32, #tpu.memory_space<vmem>>, vector<8x1xf32>
      %78 = arith.mulf %73, %77 : vector<8x1xf32>
      %cst_39 = arith.constant dense<0.000000e+00> : vector<8xf32>
      %79 = vector.multi_reduction <add>, %76, %cst_39 [1] : vector<8x8xf32> to vector<8xf32>
      %80 = vector.shape_cast %79 : vector<8xf32> to vector<8x1xf32>
      %81 = arith.addf %78, %80 : vector<8x1xf32>
      %c0_40 = arith.constant 0 : index
      %c1_41 = arith.constant 1 : index
      %82 = vector.load %arg14[%c0_40, %c1_41] : memref<8x4xf32, #tpu.memory_space<vmem>>, vector<8x1xf32>
      tpu.vector_store %arg14[%c0_40, %c1_41], %81 {strides = array<i32>} : memref<8x4xf32, #tpu.memory_space<vmem>>, vector<8x1xf32>,
      %c0_42 = arith.constant 0 : index
      %c8 = arith.constant 8 : index
      %83 = vector.load %arg15[%c0_42, %c8] : memref<8x32xf32, #tpu.memory_space<vmem>>, vector<8x8xf32>
      %84 = vector.broadcast %73 : vector<8x1xf32> to vector<8x8xf32>
      %85 = arith.mulf %84, %83 : vector<8x8xf32>
      %86 = arith.truncf %76 : vector<8x8xf32> to vector<8x8xbf16>
      %cst_43 = arith.constant dense<0.000000e+00> : vector<8x8xf32>
      %87 = tpu.matmul %86, %64, %cst_43 {dimension_numbers = #tpu.dot_dimension_numbers<[1], [0], [0], [1], [0, 0, 1, 1], [], []>} : vector<8x8xbf16>, vector<8x8xbf16>, vector<8x8xf32> -> vector<8x8xf32>
      %88 = arith.addf %85, %87 : vector<8x8xf32>
      %c0_44 = arith.constant 0 : index
      %c8_45 = arith.constant 8 : index
      %89 = vector.load %arg15[%c0_44, %c8_45] : memref<8x32xf32, #tpu.memory_space<vmem>>, vector<8x8xf32>
      tpu.vector_store %arg15[%c0_44, %c8_45], %88 {strides = array<i32>} : memref<8x32xf32, #tpu.memory_space<vmem>>, vector<8x8xf32>,
      %c0_46 = arith.constant 0 : index
      %c1_47 = arith.constant 1 : index
      %90 = vector.load %arg13[%c0_46, %c1_47] : memref<8x4xf32, #tpu.memory_space<vmem>>, vector<8x1xf32>
      tpu.vector_store %arg13[%c0_46, %c1_47], %71 {strides = array<i32>} : memref<8x4xf32, #tpu.memory_space<vmem>>, vector<8x1xf32>,
      %91 = vector.extract_strided_slice %32 {offsets = [0, 16], sizes = [8, 8], strides = [1, 1]} : vector<8x32xbf16> to vector<8x8xbf16>
      %92 = vector.extract_strided_slice %22 {offsets = [0, 16], sizes = [8, 8], strides = [1, 1]} : vector<8x64xbf16> to vector<8x8xbf16>
      %93 = vector.extract_strided_slice %22 {offsets = [0, 48], sizes = [8, 8], strides = [1, 1]} : vector<8x64xbf16> to vector<8x8xbf16>
      %cst_48 = arith.constant dense<0.000000e+00> : vector<8x8xf32>
      %94 = tpu.matmul %91, %92, %cst_48 {dimension_numbers = #tpu.dot_dimension_numbers<[1], [1], [0], [0], [0, 0, 1, 0], [], []>} : vector<8x8xbf16>, vector<8x8xbf16>, vector<8x8xf32> -> vector<8x8xf32>
      %cst_49 = arith.constant 0xFF800000 : f32
      %95 = vector.broadcast %cst_49 : f32 to vector<8x8xf32>
      %96 = arith.select %31, %94, %95 : vector<8x8xi1>, vector<8x8xf32>
      %cst_50 = arith.constant dense<0xFF800000> : vector<8xf32>
      %97 = vector.multi_reduction <maximumf>, %96, %cst_50 [1] : vector<8x8xf32> to vector<8xf32>
      %98 = vector.shape_cast %97 : vector<8xf32> to vector<8x1xf32>
      %c0_51 = arith.constant 0 : index
      %c2 = arith.constant 2 : index
      %99 = vector.load %arg13[%c0_51, %c2] : memref<8x4xf32, #tpu.memory_space<vmem>>, vector<8x1xf32>
      %100 = arith.maximumf %99, %98 : vector<8x1xf32>
      %101 = arith.subf %99, %100 : vector<8x1xf32>
      %102 = math.exp %101 : vector<8x1xf32>
      %103 = vector.broadcast %100 : vector<8x1xf32> to vector<8x8xf32>
      %104 = arith.subf %96, %103 : vector<8x8xf32>
      %105 = math.exp %104 : vector<8x8xf32>
      %c0_52 = arith.constant 0 : index
      %c2_53 = arith.constant 2 : index
      %106 = vector.load %arg14[%c0_52, %c2_53] : memref<8x4xf32, #tpu.memory_space<vmem>>, vector<8x1xf32>
      %107 = arith.mulf %102, %106 : vector<8x1xf32>
      %cst_54 = arith.constant dense<0.000000e+00> : vector<8xf32>
      %108 = vector.multi_reduction <add>, %105, %cst_54 [1] : vector<8x8xf32> to vector<8xf32>
      %109 = vector.shape_cast %108 : vector<8xf32> to vector<8x1xf32>
      %110 = arith.addf %107, %109 : vector<8x1xf32>
      %c0_55 = arith.constant 0 : index
      %c2_56 = arith.constant 2 : index
      %111 = vector.load %arg14[%c0_55, %c2_56] : memref<8x4xf32, #tpu.memory_space<vmem>>, vector<8x1xf32>
      tpu.vector_store %arg14[%c0_55, %c2_56], %110 {strides = array<i32>} : memref<8x4xf32, #tpu.memory_space<vmem>>, vector<8x1xf32>,
      %c0_57 = arith.constant 0 : index
      %c16 = arith.constant 16 : index
      %112 = vector.load %arg15[%c0_57, %c16] : memref<8x32xf32, #tpu.memory_space<vmem>>, vector<8x8xf32>
      %113 = vector.broadcast %102 : vector<8x1xf32> to vector<8x8xf32>
      %114 = arith.mulf %113, %112 : vector<8x8xf32>
      %115 = arith.truncf %105 : vector<8x8xf32> to vector<8x8xbf16>
      %cst_58 = arith.constant dense<0.000000e+00> : vector<8x8xf32>
      %116 = tpu.matmul %115, %93, %cst_58 {dimension_numbers = #tpu.dot_dimension_numbers<[1], [0], [0], [1], [0, 0, 1, 1], [], []>} : vector<8x8xbf16>, vector<8x8xbf16>, vector<8x8xf32> -> vector<8x8xf32>
      %117 = arith.addf %114, %116 : vector<8x8xf32>
      %c0_59 = arith.constant 0 : index
      %c16_60 = arith.constant 16 : index
      %118 = vector.load %arg15[%c0_59, %c16_60] : memref<8x32xf32, #tpu.memory_space<vmem>>, vector<8x8xf32>
      tpu.vector_store %arg15[%c0_59, %c16_60], %117 {strides = array<i32>} : memref<8x32xf32, #tpu.memory_space<vmem>>, vector<8x8xf32>,
      %c0_61 = arith.constant 0 : index
      %c2_62 = arith.constant 2 : index
      %119 = vector.load %arg13[%c0_61, %c2_62] : memref<8x4xf32, #tpu.memory_space<vmem>>, vector<8x1xf32>
      tpu.vector_store %arg13[%c0_61, %c2_62], %100 {strides = array<i32>} : memref<8x4xf32, #tpu.memory_space<vmem>>, vector<8x1xf32>,
      %120 = vector.extract_strided_slice %32 {offsets = [0, 24], sizes = [8, 8], strides = [1, 1]} : vector<8x32xbf16> to vector<8x8xbf16>
      %121 = vector.extract_strided_slice %22 {offsets = [0, 24], sizes = [8, 8], strides = [1, 1]} : vector<8x64xbf16> to vector<8x8xbf16>
      %122 = vector.extract_strided_slice %22 {offsets = [0, 56], sizes = [8, 8], strides = [1, 1]} : vector<8x64xbf16> to vector<8x8xbf16>
      %cst_63 = arith.constant dense<0.000000e+00> : vector<8x8xf32>
      %123 = tpu.matmul %120, %121, %cst_63 {dimension_numbers = #tpu.dot_dimension_numbers<[1], [1], [0], [0], [0, 0, 1, 0], [], []>} : vector<8x8xbf16>, vector<8x8xbf16>, vector<8x8xf32> -> vector<8x8xf32>
      %cst_64 = arith.constant 0xFF800000 : f32
      %124 = vector.broadcast %cst_64 : f32 to vector<8x8xf32>
      %125 = arith.select %31, %123, %124 : vector<8x8xi1>, vector<8x8xf32>
      %cst_65 = arith.constant dense<0xFF800000> : vector<8xf32>
      %126 = vector.multi_reduction <maximumf>, %125, %cst_65 [1] : vector<8x8xf32> to vector<8xf32>
      %127 = vector.shape_cast %126 : vector<8xf32> to vector<8x1xf32>
      %c0_66 = arith.constant 0 : index
      %c3 = arith.constant 3 : index
      %128 = vector.load %arg13[%c0_66, %c3] : memref<8x4xf32, #tpu.memory_space<vmem>>, vector<8x1xf32>
      %129 = arith.maximumf %128, %127 : vector<8x1xf32>
      %130 = arith.subf %128, %129 : vector<8x1xf32>
      %131 = math.exp %130 : vector<8x1xf32>
      %132 = vector.broadcast %129 : vector<8x1xf32> to vector<8x8xf32>
      %133 = arith.subf %125, %132 : vector<8x8xf32>
      %134 = math.exp %133 : vector<8x8xf32>
      %c0_67 = arith.constant 0 : index
      %c3_68 = arith.constant 3 : index
      %135 = vector.load %arg14[%c0_67, %c3_68] : memref<8x4xf32, #tpu.memory_space<vmem>>, vector<8x1xf32>
      %136 = arith.mulf %131, %135 : vector<8x1xf32>
      %cst_69 = arith.constant dense<0.000000e+00> : vector<8xf32>
      %137 = vector.multi_reduction <add>, %134, %cst_69 [1] : vector<8x8xf32> to vector<8xf32>
      %138 = vector.shape_cast %137 : vector<8xf32> to vector<8x1xf32>
      %139 = arith.addf %136, %138 : vector<8x1xf32>
      %c0_70 = arith.constant 0 : index
      %c3_71 = arith.constant 3 : index
      %140 = vector.load %arg14[%c0_70, %c3_71] : memref<8x4xf32, #tpu.memory_space<vmem>>, vector<8x1xf32>
      tpu.vector_store %arg14[%c0_70, %c3_71], %139 {strides = array<i32>} : memref<8x4xf32, #tpu.memory_space<vmem>>, vector<8x1xf32>,
      %c0_72 = arith.constant 0 : index
      %c24 = arith.constant 24 : index
      %141 = vector.load %arg15[%c0_72, %c24] : memref<8x32xf32, #tpu.memory_space<vmem>>, vector<8x8xf32>
      %142 = vector.broadcast %131 : vector<8x1xf32> to vector<8x8xf32>
      %143 = arith.mulf %142, %141 : vector<8x8xf32>
      %144 = arith.truncf %134 : vector<8x8xf32> to vector<8x8xbf16>
      %cst_73 = arith.constant dense<0.000000e+00> : vector<8x8xf32>
      %145 = tpu.matmul %144, %122, %cst_73 {dimension_numbers = #tpu.dot_dimension_numbers<[1], [0], [0], [1], [0, 0, 1, 1], [], []>} : vector<8x8xbf16>, vector<8x8xbf16>, vector<8x8xf32> -> vector<8x8xf32>
      %146 = arith.addf %143, %145 : vector<8x8xf32>
      %c0_74 = arith.constant 0 : index
      %c24_75 = arith.constant 24 : index
      %147 = vector.load %arg15[%c0_74, %c24_75] : memref<8x32xf32, #tpu.memory_space<vmem>>, vector<8x8xf32>
      tpu.vector_store %arg15[%c0_74, %c24_75], %146 {strides = array<i32>} : memref<8x32xf32, #tpu.memory_space<vmem>>, vector<8x8xf32>,
      %c0_76 = arith.constant 0 : index
      %c3_77 = arith.constant 3 : index
      %148 = vector.load %arg13[%c0_76, %c3_77] : memref<8x4xf32, #tpu.memory_space<vmem>>, vector<8x1xf32>
      tpu.vector_store %arg13[%c0_76, %c3_77], %129 {strides = array<i32>} : memref<8x4xf32, #tpu.memory_space<vmem>>, vector<8x1xf32>,
    } else {
    }
    %c0_i32_4 = arith.constant 0 : i32
    %11 = arith.cmpi eq, %arg2, %c0_i32_4 : i32
    %12 = arith.extui %11 : i1 to i32
    %c0_i32_5 = arith.constant 0 : i32
    %13 = arith.cmpi ne, %12, %c0_i32_5 : i32
    scf.if %13 {
      %c0 = arith.constant 0 : index
      %c0_6 = arith.constant 0 : index
      %14 = vector.load %arg14[%c0, %c0_6] : memref<8x4xf32, #tpu.memory_space<vmem>>, vector<8x4xf32>
      %15 = tpu.reciprocal %14 {approx = true} : vector<8x4xf32> -> vector<8x4xf32>
      %c0_7 = arith.constant 0 : index
      %c0_8 = arith.constant 0 : index
      %16 = vector.load %arg15[%c0_7, %c0_8] : memref<8x32xf32, #tpu.memory_space<vmem>>, vector<8x32xf32>
      %17 = vector.extract_strided_slice %16 {offsets = [0, 0], sizes = [8, 8], strides = [1, 1]} : vector<8x32xf32> to vector<8x8xf32>
      %18 = vector.extract_strided_slice %15 {offsets = [0, 0], sizes = [8, 1], strides = [1, 1]} : vector<8x4xf32> to vector<8x1xf32>
      %19 = vector.broadcast %18 : vector<8x1xf32> to vector<8x8xf32>
      %20 = arith.mulf %17, %19 : vector<8x8xf32>
      %21 = arith.truncf %20 : vector<8x8xf32> to vector<8x8xbf16>
      %22 = vector.extract_strided_slice %16 {offsets = [0, 8], sizes = [8, 8], strides = [1, 1]} : vector<8x32xf32> to vector<8x8xf32>
      %23 = vector.extract_strided_slice %15 {offsets = [0, 1], sizes = [8, 1], strides = [1, 1]} : vector<8x4xf32> to vector<8x1xf32>
      %24 = vector.broadcast %23 : vector<8x1xf32> to vector<8x8xf32>
      %25 = arith.mulf %22, %24 : vector<8x8xf32>
      %26 = arith.truncf %25 : vector<8x8xf32> to vector<8x8xbf16>
      %27 = vector.extract_strided_slice %16 {offsets = [0, 16], sizes = [8, 8], strides = [1, 1]} : vector<8x32xf32> to vector<8x8xf32>
      %28 = vector.extract_strided_slice %15 {offsets = [0, 2], sizes = [8, 1], strides = [1, 1]} : vector<8x4xf32> to vector<8x1xf32>
      %29 = vector.broadcast %28 : vector<8x1xf32> to vector<8x8xf32>
      %30 = arith.mulf %27, %29 : vector<8x8xf32>
      %31 = arith.truncf %30 : vector<8x8xf32> to vector<8x8xbf16>
      %32 = vector.extract_strided_slice %16 {offsets = [0, 24], sizes = [8, 8], strides = [1, 1]} : vector<8x32xf32> to vector<8x8xf32>
      %33 = vector.extract_strided_slice %15 {offsets = [0, 3], sizes = [8, 1], strides = [1, 1]} : vector<8x4xf32> to vector<8x1xf32>
      %34 = vector.broadcast %33 : vector<8x1xf32> to vector<8x8xf32>
      %35 = arith.mulf %32, %34 : vector<8x8xf32>
      %36 = arith.truncf %35 : vector<8x8xf32> to vector<8x8xbf16>
      %37 = tpu.concatenate %21, %26, %31, %36 in 1 : vector<8x8xbf16>, vector<8x8xbf16>, vector<8x8xbf16>, vector<8x8xbf16> -> vector<8x32xbf16>
      %c0_9 = arith.constant 0 : index
      %c0_10 = arith.constant 0 : index
      %38 = vector.load %arg9[%c0_9, %c0_10] : memref<32x32xbf16, #tpu.memory_space<vmem>>, vector<32x32xbf16>
      %cst = arith.constant dense<0.000000e+00> : vector<8x32xf32>
      %39 = tpu.matmul %37, %38, %cst {dimension_numbers = #tpu.dot_dimension_numbers<[1], [0], [0], [1], [0, 0, 1, 1], [], []>} : vector<8x32xbf16>, vector<32x32xbf16>, vector<8x32xf32> -> vector<8x32xf32>
      %c0_11 = arith.constant 0 : index
      %c0_12 = arith.constant 0 : index
      %40 = vector.load %arg10[%c0_11, %c0_12] : memref<1x32xf32, #tpu.memory_space<vmem>>, vector<1x32xf32>
      %41 = vector.broadcast %40 : vector<1x32xf32> to vector<8x32xf32>
      %42 = arith.addf %39, %41 : vector<8x32xf32>
      %c0_13 = arith.constant 0 : index
      %c0_14 = arith.constant 0 : index
      %c0_15 = arith.constant 0 : index
      %43 = vector.load %arg11[%c0_13, %c0_14, %c0_15] : memref<1x8x32xf32, #tpu.memory_space<vmem>>, vector<1x8x32xf32>
      %44 = vector.shape_cast %43 : vector<1x8x32xf32> to vector<8x32xf32>
      %45 = vector.shape_cast %42 : vector<8x32xf32> to vector<1x8x32xf32>
      tpu.vector_store %arg11[%c0_13, %c0_14, %c0_15], %45 {strides = array<i32>} : memref<1x8x32xf32, #tpu.memory_space<vmem>>, vector<1x8x32xf32>,
    } else {
    }
    return
  }
  func.func @transform_0(%arg0: i32, %arg1: i32, %arg2: i32) -> (i32, i32, i32) {
    %c0_i32 = arith.constant 0 : i32
    %c0_i32_0 = arith.constant 0 : i32
    return %arg0, %arg1, %c0_i32 : i32, i32, i32
  }
  func.func @transform_1(%arg0: i32, %arg1: i32, %arg2: i32) -> (i32, i32, i32) {
    %c0_i32 = arith.constant 0 : i32
    %c0_i32_0 = arith.constant 0 : i32
    return %arg0, %arg2, %c0_i32 : i32, i32, i32
  }
  func.func @transform_2(%arg0: i32, %arg1: i32, %arg2: i32) -> (i32, i32) {
    %c0_i32 = arith.constant 0 : i32
    %c0_i32_0 = arith.constant 0 : i32
    %c0_i32_1 = arith.constant 0 : i32
    return %c0_i32, %c0_i32_0 : i32, i32
  }
  func.func @transform_3(%arg0: i32, %arg1: i32, %arg2: i32) -> (i32, i32) {
    %c0_i32 = arith.constant 0 : i32
    %c0_i32_0 = arith.constant 0 : i32
    %c0_i32_1 = arith.constant 0 : i32
    return %c0_i32, %c0_i32_0 : i32, i32
  }
  func.func @transform_4(%arg0: i32, %arg1: i32, %arg2: i32) -> (i32, i32) {
    %c0_i32 = arith.constant 0 : i32
    %c0_i32_0 = arith.constant 0 : i32
    %c0_i32_1 = arith.constant 0 : i32
    return %c0_i32, %c0_i32_0 : i32, i32
  }
  func.func @transform_5(%arg0: i32, %arg1: i32, %arg2: i32) -> (i32, i32) {
    %c0_i32 = arith.constant 0 : i32
    %c0_i32_0 = arith.constant 0 : i32
    %c0_i32_1 = arith.constant 0 : i32
    return %c0_i32, %c0_i32_0 : i32, i32
  }
  func.func @transform_6(%arg0: i32, %arg1: i32, %arg2: i32) -> (i32, i32) {
    %c0_i32 = arith.constant 0 : i32
    %c0_i32_0 = arith.constant 0 : i32
    %c0_i32_1 = arith.constant 0 : i32
    return %c0_i32, %c0_i32_0 : i32, i32
  }
  func.func @transform_7(%arg0: i32, %arg1: i32, %arg2: i32) -> (i32, i32) {
    %c0_i32 = arith.constant 0 : i32
    %c0_i32_0 = arith.constant 0 : i32
    %c0_i32_1 = arith.constant 0 : i32
    return %c0_i32, %c0_i32_0 : i32, i32
  }
  func.func @transform_8(%arg0: i32, %arg1: i32, %arg2: i32) -> (i32, i32, i32) {
    %c0_i32 = arith.constant 0 : i32
    %c0_i32_0 = arith.constant 0 : i32
    return %arg0, %arg1, %c0_i32 : i32, i32, i32
  }
}

</mosaic_0001>

<llo_original>
// kernel: tpu_custom_call.1
$region0: #{tpu_custom_call.1}
  #allocation0 [shape = 'u32[]', space=smem, size = 0x4, offset = 0x4, fixed_abs, tag = 'smem constant byte address 0x4 - core index']
  #allocation1 [shape = 'u32[144,128]{1,0:T(1,128)}', space=vmem, size = 0x12000, scoped, tag = 'internal scratch']
  #allocation2 [shape = 'bf16[8,32]{1,0:T(8,128)(2,1)}', space=vmem, size = 0x800, scoped, tag = 'scratch operand']
  #allocation3 [shape = 'f32[8,4]{1,0:T(8,128)}', space=vmem, size = 0x1000, scoped, tag = 'scratch operand']
  #allocation4 [shape = 'f32[8,4]{1,0:T(8,128)}', space=vmem, size = 0x1000, scoped, tag = 'scratch operand']
  #allocation5 [shape = 'f32[8,32]{1,0:T(8,128)}', space=vmem, size = 0x1000, scoped, tag = 'scratch operand']
  %s0 = inlined_call_operand.hbm [shape: f32[2,8,32], index: 0, kind: input, shape index: {}]
  %s1 = inlined_call_operand.hbm [shape: f32[2,8,32], index: 1, kind: input, shape index: {}]
  %s2 = inlined_call_operand.hbm [shape: bf16[32,32], index: 2, kind: input, shape index: {}]
  %s3 = inlined_call_operand.vmem [shape: f32[1,32], index: 3, kind: input, shape index: {}]
  %s4 = inlined_call_operand.hbm [shape: bf16[32,64], index: 4, kind: input, shape index: {}]
  %s5 = inlined_call_operand.vmem [shape: f32[1,64], index: 5, kind: input, shape index: {}]
  %s6 = inlined_call_operand.vmem [shape: bf16[32,32], index: 6, kind: input, shape index: {}]
  %s7 = inlined_call_operand.vmem [shape: f32[1,32], index: 7, kind: input, shape index: {}]
  %s8 = inlined_call_operand.hbm [shape: f32[2,8,32], index: 8, kind: output, shape index: {}]
  %s9 = sld [smem:[#allocation0]]
  $region93: #{tpu_custom_call.1} parent=0
    _
  %s11 = ssub.s32 1, %s9
  %s12 = scalar_select 0, %s11, %s9
  $region1: #{tpu_custom_call.1} parent=0
    #allocation6 [shape = 'u8[8192]{0}', space=vmem, size = 0x2000, scoped, tag = 'input window, operand 0']
    #allocation7 [shape = 's32[2]{0}', space=sflag, size = 0x8, scoped, tag = 'scoped memory for tpu_custom_call.1']
    #allocation8 [shape = 's32[2]{0}', space=sflag, size = 0x8, scoped, tag = 'scoped memory for tpu_custom_call.1']
    #allocation9 [shape = 'u8[8192]{0}', space=vmem, size = 0x2000, scoped, tag = 'input window, operand 1']
    #allocation10 [shape = 's32[2]{0}', space=sflag, size = 0x8, scoped, tag = 'scoped memory for tpu_custom_call.1']
    #allocation11 [shape = 'u8[8192]{0}', space=vmem, size = 0x2000, scoped, tag = 'input window, operand 2, single buffered']
    #allocation12 [shape = 'u8[8192]{0}', space=vmem, size = 0x2000, scoped, tag = 'input window, operand 4, single buffered']
    #allocation13 [shape = 's32[1]{0}', space=sflag, size = 0x4, scoped, tag = 'scoped memory for tpu_custom_call.1']
    #allocation14 [shape = 'u8[8192]{0}', space=vmem, size = 0x2000, scoped, tag = 'output window, operand 0']
    %13 = vsyncpa [#allocation7], 0
    %s14 = scalar_lea.sflag [#allocation7], 1
    %15 = vsyncpa %s14, 0
    %16 = vsyncpa [#allocation10], 0
    %s17 = scalar_lea.sflag [#allocation10], 1
    %18 = vsyncpa %s17, 0
    %19 = vsyncpa [#allocation13], 0
    %20 = vsyncpa [#allocation8], 0
    %s21 = scalar_lea.sflag [#allocation8], 1
    %22 = vsyncpa %s21, 0
    loop: start=0, step=1, limit=4
    $region2: #{tpu_custom_call.1} parent=1 // loop_pre_header
      _
    $region3: #{tpu_custom_call.1} parent=1 // loop_header
      %s24 = sphi 0, %s28
      %p25 = scmp.ge.s32.totalorder %s24, 4
      %s31 = sphi 0, %s50
      %s32 = sphi 0, %s46
      %s33 = sphi 0, %s42
      %s34 = sphi 0, %s31
      %s35 = sphi 0, %s32
      %s36 = sphi 0, %s33
      %s37 = sphi 0, %s34
      %s38 = sphi 0, %s35
      %s39 = sphi 0, %s36
      %s55 = sphi 0, %s57
      %s58 = sphi 0, %s55
      %s59 = sphi 0, %s58
      %s75 = sphi 0, %s59
      %s83 = sphi 0, %s85
      %s86 = sphi 0, %s83
      %s87 = sphi 0, %s86
      %s103 = sphi 0, %s87
      %s107 = sphi 0, %s107
      %s109 = sphi 0, %s107
      %s110 = sphi 0, %s109
      %s124 = sphi 0, %s110
      %s128 = sphi 0, %s128
      %s130 = sphi 0, %s128
      %s131 = sphi 0, %s130
      %s145 = sphi 0, %s131
      %s149 = sphi 0, %s149
      %s151 = sphi 0, %s149
      %s152 = sphi 0, %s151
      %s166 = sphi 0, %s152
      %s170 = sphi 0, %s170
      %s172 = sphi 0, %s170
      %s173 = sphi 0, %s172
      %s187 = sphi 0, %s173
      %s191 = sphi 0, %s191
      %s193 = sphi 0, %s191
      %s194 = sphi 0, %s193
      %s208 = sphi 0, %s194
      %s212 = sphi 0, %s212
      %s214 = sphi 0, %s212
      %s215 = sphi 0, %s214
      %s229 = sphi 0, %s215
      %s237 = sphi 0, %s239
      %s240 = sphi 0, %s237
      %s241 = sphi 0, %s240
      %s257 = sphi 0, %s241
    $region4: #{tpu_custom_call.1} parent=1 // loop_header_branch
      %27 = sbr.rel (%p25) target = $region8
    $region5: #{tpu_custom_call.1} parent=1 // loop_body
      %s29 = ssub.s32 %s24, 1
      %s30 = ssub.s32 %s24, 2
      %s40 = sadd.s32 1, %s33
      %p41 = scmp.ge.s32.totalorder %s40, 1
      %s42 = scalar_select %p41, 0, %s40
      %s43 = sadd.s32 1, %s32
      %s44 = scalar_select %p41, %s43, %s32
      %p45 = scmp.ge.s32.totalorder %s44, 1
      %s46 = scalar_select %p45, 0, %s44
      %s47 = sadd.s32 1, %s31
      %s48 = scalar_select %p45, %s47, %s31
      %p49 = scmp.ge.s32.totalorder %s48, 2
      %s50 = scalar_select %p49, 0, %s48
      %s51 = ssub.s32 %s31, %s50
      %s52 = ssub.s32 %s32, %s46
      %s53 = sor.u32 %s51, %s52
      %p54 = scmp.eq.s32.totalorder %s53, 0
      %s56 = sadd.s32 %s55, 1
      %s57 = scalar_select %p54, %s55, %s56
      %p60 = pneg %p54
      %p61 = scmp.eq.s32.totalorder %s24, 1
      %p62 = por %p60, %p61
      %p63 = scmp.ne.s32.totalorder %s55, %s58
      %p64 = scmp.eq.s32.totalorder %s24, 0
      %p65 = por %p63, %p64
      %p66 = scmp.ne.s32.totalorder %s55, %s58
      %p67 = scmp.eq.s32.totalorder %s29, 1
      %p68 = por %p66, %p67
      %p69 = scmp.ne.s32.totalorder %s58, %s59
      %p70 = scmp.eq.s32.totalorder %s29, 0
      %p71 = por %p69, %p70
      %p72 = scmp.ne.s32.totalorder %s58, %s59
      %p73 = scmp.eq.s32.totalorder %s30, 1
      %p74 = por %p72, %p73
      %p76 = scmp.ne.s32.totalorder %s59, %s75
      %p77 = scmp.eq.s32.totalorder %s30, 0
      %p78 = por %p76, %p77
      %s79 = ssub.s32 %s31, %s50
      %s80 = ssub.s32 %s33, %s42
      %s81 = sor.u32 %s79, %s80
      %p82 = scmp.eq.s32.totalorder %s81, 0
      %s84 = sadd.s32 %s83, 1
      %s85 = scalar_select %p82, %s83, %s84
      %p88 = pneg %p82
      %p89 = scmp.eq.s32.totalorder %s24, 1
      %p90 = por %p88, %p89
      %p91 = scmp.ne.s32.totalorder %s83, %s86
      %p92 = scmp.eq.s32.totalorder %s24, 0
      %p93 = por %p91, %p92
      %p94 = scmp.ne.s32.totalorder %s83, %s86
      %p95 = scmp.eq.s32.totalorder %s29, 1
      %p96 = por %p94, %p95
      %p97 = scmp.ne.s32.totalorder %s86, %s87
      %p98 = scmp.eq.s32.totalorder %s29, 0
      %p99 = por %p97, %p98
      %p100 = scmp.ne.s32.totalorder %s86, %s87
      %p101 = scmp.eq.s32.totalorder %s30, 1
      %p102 = por %p100, %p101
      %p104 = scmp.ne.s32.totalorder %s87, %s103
      %p105 = scmp.eq.s32.totalorder %s30, 0
      %p106 = por %p104, %p105
      %s108 = sadd.s32 %s107, 1
      %p111 = scmp.eq.s32.totalorder %s24, 1
      %p112 = scmp.ne.s32.totalorder %s107, %s109
      %p113 = scmp.eq.s32.totalorder %s24, 0
      %p114 = por %p112, %p113
      %p115 = scmp.ne.s32.totalorder %s107, %s109
      %p116 = scmp.eq.s32.totalorder %s29, 1
      %p117 = por %p115, %p116
      %p118 = scmp.ne.s32.totalorder %s109, %s110
      %p119 = scmp.eq.s32.totalorder %s29, 0
      %p120 = por %p118, %p119
      %p121 = scmp.ne.s32.totalorder %s109, %s110
      %p122 = scmp.eq.s32.totalorder %s30, 1
      %p123 = por %p121, %p122
      %p125 = scmp.ne.s32.totalorder %s110, %s124
      %p126 = scmp.eq.s32.totalorder %s30, 0
      %p127 = por %p125, %p126
      %s129 = sadd.s32 %s128, 1
      %p132 = scmp.eq.s32.totalorder %s24, 1
      %p133 = scmp.ne.s32.totalorder %s128, %s130
      %p134 = scmp.eq.s32.totalorder %s24, 0
      %p135 = por %p133, %p134
      %p136 = scmp.ne.s32.totalorder %s128, %s130
      %p137 = scmp.eq.s32.totalorder %s29, 1
      %p138 = por %p136, %p137
      %p139 = scmp.ne.s32.totalorder %s130, %s131
      %p140 = scmp.eq.s32.totalorder %s29, 0
      %p141 = por %p139, %p140
      %p142 = scmp.ne.s32.totalorder %s130, %s131
      %p143 = scmp.eq.s32.totalorder %s30, 1
      %p144 = por %p142, %p143
      %p146 = scmp.ne.s32.totalorder %s131, %s145
      %p147 = scmp.eq.s32.totalorder %s30, 0
      %p148 = por %p146, %p147
      %s150 = sadd.s32 %s149, 1
      %p153 = scmp.eq.s32.totalorder %s24, 1
      %p154 = scmp.ne.s32.totalorder %s149, %s151
      %p155 = scmp.eq.s32.totalorder %s24, 0
      %p156 = por %p154, %p155
      %p157 = scmp.ne.s32.totalorder %s149, %s151
      %p158 = scmp.eq.s32.totalorder %s29, 1
      %p159 = por %p157, %p158
      %p160 = scmp.ne.s32.totalorder %s151, %s152
      %p161 = scmp.eq.s32.totalorder %s29, 0
      %p162 = por %p160, %p161
      %p163 = scmp.ne.s32.totalorder %s151, %s152
      %p164 = scmp.eq.s32.totalorder %s30, 1
      %p165 = por %p163, %p164
      %p167 = scmp.ne.s32.totalorder %s152, %s166
      %p168 = scmp.eq.s32.totalorder %s30, 0
      %p169 = por %p167, %p168
      %s171 = sadd.s32 %s170, 1
      %p174 = scmp.eq.s32.totalorder %s24, 1
      %p175 = scmp.ne.s32.totalorder %s170, %s172
      %p176 = scmp.eq.s32.totalorder %s24, 0
      %p177 = por %p175, %p176
      %p178 = scmp.ne.s32.totalorder %s170, %s172
      %p179 = scmp.eq.s32.totalorder %s29, 1
      %p180 = por %p178, %p179
      %p181 = scmp.ne.s32.totalorder %s172, %s173
      %p182 = scmp.eq.s32.totalorder %s29, 0
      %p183 = por %p181, %p182
      %p184 = scmp.ne.s32.totalorder %s172, %s173
      %p185 = scmp.eq.s32.totalorder %s30, 1
      %p186 = por %p184, %p185
      %p188 = scmp.ne.s32.totalorder %s173, %s187
      %p189 = scmp.eq.s32.totalorder %s30, 0
      %p190 = por %p188, %p189
      %s192 = sadd.s32 %s191, 1
      %p195 = scmp.eq.s32.totalorder %s24, 1
      %p196 = scmp.ne.s32.totalorder %s191, %s193
      %p197 = scmp.eq.s32.totalorder %s24, 0
      %p198 = por %p196, %p197
      %p199 = scmp.ne.s32.totalorder %s191, %s193
      %p200 = scmp.eq.s32.totalorder %s29, 1
      %p201 = por %p199, %p200
      %p202 = scmp.ne.s32.totalorder %s193, %s194
      %p203 = scmp.eq.s32.totalorder %s29, 0
      %p204 = por %p202, %p203
      %p205 = scmp.ne.s32.totalorder %s193, %s194
      %p206 = scmp.eq.s32.totalorder %s30, 1
      %p207 = por %p205, %p206
      %p209 = scmp.ne.s32.totalorder %s194, %s208
      %p210 = scmp.eq.s32.totalorder %s30, 0
      %p211 = por %p209, %p210
      %s213 = sadd.s32 %s212, 1
      %p216 = scmp.eq.s32.totalorder %s24, 1
      %p217 = scmp.ne.s32.totalorder %s212, %s214
      %p218 = scmp.eq.s32.totalorder %s24, 0
      %p219 = por %p217, %p218
      %p220 = scmp.ne.s32.totalorder %s212, %s214
      %p221 = scmp.eq.s32.totalorder %s29, 1
      %p222 = por %p220, %p221
      %p223 = scmp.ne.s32.totalorder %s214, %s215
      %p224 = scmp.eq.s32.totalorder %s29, 0
      %p225 = por %p223, %p224
      %p226 = scmp.ne.s32.totalorder %s214, %s215
      %p227 = scmp.eq.s32.totalorder %s30, 1
      %p228 = por %p226, %p227
      %p230 = scmp.ne.s32.totalorder %s215, %s229
      %p231 = scmp.eq.s32.totalorder %s30, 0
      %p232 = por %p230, %p231
      %s233 = ssub.s32 %s31, %s50
      %s234 = ssub.s32 %s32, %s46
      %s235 = sor.u32 %s233, %s234
      %p236 = scmp.eq.s32.totalorder %s235, 0
      %s238 = sadd.s32 %s237, 1
      %s239 = scalar_select %p236, %s237, %s238
      %p242 = pneg %p236
      %p243 = scmp.eq.s32.totalorder %s24, 1
      %p244 = por %p242, %p243
      %p245 = scmp.ne.s32.totalorder %s237, %s240
      %p246 = scmp.eq.s32.totalorder %s24, 0
      %p247 = por %p245, %p246
      %p248 = scmp.ne.s32.totalorder %s237, %s240
      %p249 = scmp.eq.s32.totalorder %s29, 1
      %p250 = por %p248, %p249
      %p251 = scmp.ne.s32.totalorder %s240, %s241
      %p252 = scmp.eq.s32.totalorder %s29, 0
      %p253 = por %p251, %p252
      %p254 = scmp.ne.s32.totalorder %s240, %s241
      %p255 = scmp.eq.s32.totalorder %s30, 1
      %p256 = por %p254, %p255
      %p258 = scmp.ne.s32.totalorder %s241, %s257
      %p259 = scmp.eq.s32.totalorder %s30, 0
      %p260 = por %p258, %p259
      %p261 = scmp.le.s32.totalorder 1, %s24
      %p262 = scmp.lt.s32.totalorder %s24, 3
      %p263 = pnand %p261, %p262
      %p264 = pneg %p263
      // Predicated region
      $region9: #{tpu_custom_call.1} parent=5 // pred_check
        _
      $region10: #{tpu_custom_call.1} parent=5 // pred_check_branch
        %266 = sbr.rel (%p263) target = $region12
      $region11: #{tpu_custom_call.1} parent=5 // pred_region
        %s267 = ssub.s32 %s24, 1
        // Predicated region
        $region13: #{tpu_custom_call.1} parent=11 // pred_check
          %p268 = pneg %p120
        $region14: #{tpu_custom_call.1} parent=11 // pred_check_branch
          %270 = sbr.rel (%p268) target = $region16
        $region15: #{tpu_custom_call.1} parent=11 // pred_region
          %s272 = ssub.s32 256, 256
          %273 = vsyncadd [#allocation10], %s272
          %s274 = sshll.u32 [#allocation11], 4
          %s275 = int_to_ptr.vmem [resolvable:$true] %s274
          %280 = dma.hbm_to_vmem [thread:$0]  %s2, 256, %s275, [#allocation10], 64, 64, 4
        $region16: #{tpu_custom_call.1} parent=11 // pred_fallthru
          _
        // Predicated region
        $region17: #{tpu_custom_call.1} parent=11 // pred_check
          %p281 = pneg %p141
        $region18: #{tpu_custom_call.1} parent=11 // pred_check_branch
          %283 = sbr.rel (%p281) target = $region20
        $region19: #{tpu_custom_call.1} parent=11 // pred_region
          _
        $region20: #{tpu_custom_call.1} parent=11 // pred_fallthru
          _
        // Predicated region
        $region21: #{tpu_custom_call.1} parent=11 // pred_check
          %p284 = pneg %p162
        $region22: #{tpu_custom_call.1} parent=11 // pred_check_branch
          %286 = sbr.rel (%p284) target = $region24
        $region23: #{tpu_custom_call.1} parent=11 // pred_region
          %s288 = ssub.s32 256, 256
          %289 = vsyncadd [#allocation13], %s288
          %s290 = sshll.u32 [#allocation12], 4
          %s291 = int_to_ptr.vmem [resolvable:$true] %s290
          %296 = dma.hbm_to_vmem [thread:$0]  %s4, 256, %s291, [#allocation13], 64, 64, 4
        $region24: #{tpu_custom_call.1} parent=11 // pred_fallthru
          _
        // Predicated region
        $region25: #{tpu_custom_call.1} parent=11 // pred_check
          %p297 = pneg %p183
        $region26: #{tpu_custom_call.1} parent=11 // pred_check_branch
          %299 = sbr.rel (%p297) target = $region28
        $region27: #{tpu_custom_call.1} parent=11 // pred_region
          _
        $region28: #{tpu_custom_call.1} parent=11 // pred_fallthru
          _
        // Predicated region
        $region29: #{tpu_custom_call.1} parent=11 // pred_check
          %p300 = pneg %p204
        $region30: #{tpu_custom_call.1} parent=11 // pred_check_branch
          %302 = sbr.rel (%p300) target = $region32
        $region31: #{tpu_custom_call.1} parent=11 // pred_region
          _
        $region32: #{tpu_custom_call.1} parent=11 // pred_fallthru
          _
        // Predicated region
        $region33: #{tpu_custom_call.1} parent=11 // pred_check
          %p303 = pneg %p225
        $region34: #{tpu_custom_call.1} parent=11 // pred_check_branch
          %305 = sbr.rel (%p303) target = $region36
        $region35: #{tpu_custom_call.1} parent=11 // pred_region
          _
        $region36: #{tpu_custom_call.1} parent=11 // pred_fallthru
          _
      $region12: #{tpu_custom_call.1} parent=5 // pred_fallthru
        _
      %p306 = scmp.lt.s32.totalorder %s24, 2
      // Predicated region
      $region37: #{tpu_custom_call.1} parent=5 // pred_check
        %p307 = pneg %p306
      $region38: #{tpu_custom_call.1} parent=5 // pred_check_branch
        %309 = sbr.rel (%p307) target = $region40
      $region39: #{tpu_custom_call.1} parent=5 // pred_region
        // Predicated region
        $region41: #{tpu_custom_call.1} parent=39 // pred_check
          %p310 = pneg %p65
        $region42: #{tpu_custom_call.1} parent=39 // pred_check_branch
          %312 = sbr.rel (%p310) target = $region44
        $region43: #{tpu_custom_call.1} parent=39 // pred_region
          %s313 = sand.u32 %s55, 1
          %s314 = scalar_lea.sflag [#allocation7], %s313
          %s315 = sand.u32 %s55, 1
          %s316 = smul.addr %s315, 8
          %s317 = scalar_lea.vmem [#allocation6], %s316
          %s319 = ssub.s32 128, 128
          %320 = vsyncadd %s314, %s319
          %s321 = sadd.s32 %s32, %s31
          %s322 = smul.addr %s321, 128
          %s323 = scalar_lea.hbm %s0, %s322
          %s325 = sshll.u32 %s317, 4
          %s326 = int_to_ptr.vmem [resolvable:$true] %s325
          %328 = dma.hbm_to_vmem [thread:$0]  %s323, 128, %s326, %s314
        $region44: #{tpu_custom_call.1} parent=39 // pred_fallthru
          _
        // Predicated region
        $region45: #{tpu_custom_call.1} parent=39 // pred_check
          %p329 = pneg %p93
        $region46: #{tpu_custom_call.1} parent=39 // pred_check_branch
          %331 = sbr.rel (%p329) target = $region48
        $region47: #{tpu_custom_call.1} parent=39 // pred_region
          %s332 = sand.u32 %s24, 1
          %s333 = scalar_lea.sflag [#allocation10], %s332
          %s334 = sand.u32 %s83, 1
          %s335 = smul.addr %s334, 8
          %s336 = scalar_lea.vmem [#allocation9], %s335
          %s338 = ssub.s32 128, 128
          %339 = vsyncadd %s333, %s338
          %s340 = sadd.s32 %s33, %s31
          %s341 = smul.addr %s340, 128
          %s342 = scalar_lea.hbm %s1, %s341
          %s344 = sshll.u32 %s336, 4
          %s345 = int_to_ptr.vmem [resolvable:$true] %s344
          %347 = dma.hbm_to_vmem [thread:$0]  %s342, 128, %s345, %s333
        $region48: #{tpu_custom_call.1} parent=39 // pred_fallthru
          _
      $region40: #{tpu_custom_call.1} parent=5 // pred_fallthru
        _
      %p348 = scmp.le.s32.totalorder 1, %s24
      %p349 = scmp.lt.s32.totalorder %s24, 3
      %p350 = pnand %p348, %p349
      %p351 = pneg %p350
      // Predicated region
      $region49: #{tpu_custom_call.1} parent=5 // pred_check
        _
      $region50: #{tpu_custom_call.1} parent=5 // pred_check_branch
        %353 = sbr.rel (%p350) target = $region52
      $region51: #{tpu_custom_call.1} parent=5 // pred_region
        %s354 = ssub.s32 %s24, 1
        %s355 = sand.u32 %s58, 1
        %s356 = scalar_lea.sflag [#allocation7], %s355
        %s357 = sand.u32 %s58, 1
        %s358 = smul.addr %s357, 8
        %s359 = scalar_lea.vmem [#allocation6], %s358
        // Predicated region
        $region53: #{tpu_custom_call.1} parent=51 // pred_check
          %p360 = pneg %p71
        $region54: #{tpu_custom_call.1} parent=51 // pred_check_branch
          %362 = sbr.rel (%p360) target = $region56
        $region55: #{tpu_custom_call.1} parent=51 // pred_region
          %363 = dma.done %s356, 128
        $region56: #{tpu_custom_call.1} parent=51 // pred_fallthru
          _
        %s364 = sand.u32 %s29, 1
        %s365 = scalar_lea.sflag [#allocation10], %s364
        %s366 = sand.u32 %s86, 1
        %s367 = smul.addr %s366, 8
        %s368 = scalar_lea.vmem [#allocation9], %s367
        // Predicated region
        $region57: #{tpu_custom_call.1} parent=51 // pred_check
          %p369 = pneg %p99
        $region58: #{tpu_custom_call.1} parent=51 // pred_check_branch
          %371 = sbr.rel (%p369) target = $region60
        $region59: #{tpu_custom_call.1} parent=51 // pred_region
          %372 = dma.done %s365, 128
        $region60: #{tpu_custom_call.1} parent=51 // pred_fallthru
          _
        // Predicated region
        $region61: #{tpu_custom_call.1} parent=51 // pred_check
          %p373 = pneg %p120
        $region62: #{tpu_custom_call.1} parent=51 // pred_check_branch
          %375 = sbr.rel (%p373) target = $region64
        $region63: #{tpu_custom_call.1} parent=51 // pred_region
          %376 = dma.done [#allocation10], 256
        $region64: #{tpu_custom_call.1} parent=51 // pred_fallthru
          _
        // Predicated region
        $region65: #{tpu_custom_call.1} parent=51 // pred_check
          %p377 = pneg %p162
        $region66: #{tpu_custom_call.1} parent=51 // pred_check_branch
          %379 = sbr.rel (%p377) target = $region68
        $region67: #{tpu_custom_call.1} parent=51 // pred_region
          %380 = dma.done [#allocation13], 256
        $region68: #{tpu_custom_call.1} parent=51 // pred_fallthru
          _
        %s381 = sand.u32 %s58, 1
        %s382 = scalar_lea.sflag [#allocation7], %s381
        %s383 = sand.u32 %s58, 1
        %s384 = smul.addr %s383, 8
        %s385 = scalar_lea.vmem [#allocation6], %s384
        %p386 = pneg %p71
        %p387 = pneg %p68
        %s388 = sand.u32 %s29, 1
        %s389 = scalar_lea.sflag [#allocation10], %s388
        %s390 = sand.u32 %s86, 1
        %s391 = smul.addr %s390, 8
        %s392 = scalar_lea.vmem [#allocation9], %s391
        %p393 = pneg %p99
        %p394 = pneg %p96
        %p395 = pneg %p120
        %p396 = pneg %p117
        %p397 = pneg %p141
        %p398 = pneg %p138
        %p399 = pneg %p162
        %p400 = pneg %p159
        %p401 = pneg %p183
        %p402 = pneg %p180
        %p403 = pneg %p204
        %p404 = pneg %p201
        %p405 = pneg %p225
        %p406 = pneg %p222
        %p407 = pneg %p253
        %p408 = pneg %p250
        %s409 = sand.u32 %s240, 1
        %s410 = scalar_lea.sflag [#allocation8], %s409
        %s411 = sand.u32 %s240, 1
        %s412 = smul.addr %s411, 8
        %s413 = scalar_lea.vmem [#allocation14], %s412
        %p415 = scmp.eq.s32.totalorder %s36, 0
        // Predicated region
        $region69: #{tpu_custom_call.1} parent=51 // pred_check
          %p416 = pneg %p415
        $region70: #{tpu_custom_call.1} parent=51 // pred_check_branch
          %418 = sbr.rel (%p416) target = $region72
        $region71: #{tpu_custom_call.1} parent=51 // pred_region
          %v419 = vld [vmem:[%s368] sm:$0xff]
          %v420 = vpack.c.bf16 %v419, %v419
          %v421 = vld [vmem:[#allocation12] sm:$0xf]
          %v422 = vld [vmem:[#allocation12 + $0x4] sm:$0xf]
          %v423 = vld [vmem:[#allocation12 + $0x8] sm:$0xf]
          %v424 = vld [vmem:[#allocation12 + $0xc] sm:$0xf]
          %v425 = vld [vmem:[%s5] sm:$0x1]
          %v427 = vlaneseq
          %v428 = vshrl.u32 %v427, 7
          %v429 = vsub.s32 0, %v428
          %v430 = vrot.slane %v425, %v429
          %v436 = vunpack.c.l.b16 %v421
          %v437 = vunpack.c.l.b16 %v422
          %v438 = vunpack.c.l.b16 %v423
          %v439 = vunpack.c.l.b16 %v424
          %v440 = vpack.c.b16 %v437, %v436
          %v441 = vpack.c.b16 %v439, %v438
          %vm444 = vcmask 261120
          %v446 = vsel %vm444, %v420, 0
          %448 = vmatprep.subr.bf16.mxu0 0
          %449 = vmatpush1.bf16.msra.mxu0 %v440
          %450 = vmatprep.subr.bf16.mxu0 0
          %451 = vmatpush1.bf16.msra.mxu0 %v441
          %452 = vmatprep.subr.bf16.mxu0 0
          %453 = vmatpush1.bf16.msra.mxu0 0
          %454 = vmatprep.subr.bf16.mxu0 0
          %455 = vmatpush1.bf16.msra.mxu0 0
          %456 = vmatprep.subr.bf16.mxu0 0
          %457 = vmatpush1.bf16.msra.mxu0 0
          %458 = vmatprep.subr.bf16.mxu0 0
          %459 = vmatpush1.bf16.msra.mxu0 0
          %460 = vmatprep.subr.bf16.mxu0 0
          %461 = vmatpush1.bf16.msra.mxu0 0
          %462 = vmatprep.subr.bf16.mxu0 0
          %463 = vmatpush1.bf16.msra.mxu0 0
          %464 = vmatprep.subr.bf16.mxu0 0
          %465 = vmatpush1.bf16.msra.mxu0 0
          %466 = vmatprep.subr.bf16.mxu0 0
          %467 = vmatpush1.bf16.msra.mxu0 0
          %468 = vmatprep.subr.bf16.mxu0 0
          %469 = vmatpush1.bf16.msra.mxu0 0
          %470 = vmatprep.subr.bf16.mxu0 0
          %471 = vmatpush1.bf16.msra.mxu0 0
          %472 = vmatprep.subr.bf16.mxu0 0
          %473 = vmatpush1.bf16.msra.mxu0 0
          %474 = vmatprep.subr.bf16.mxu0 0
          %475 = vmatpush1.bf16.msra.mxu0 0
          %476 = vmatprep.subr.bf16.mxu0 0
          %477 = vmatpush1.bf16.msra.mxu0 0
          %478 = vmatprep.subr.bf16.mxu0 0
          %479 = vmatpush1.bf16.msra.mxu0 0
          %480 = vmatprep.mubr.bf16.mxu0 0
          %481 = vmatmul.mubr.bf16.gmra.mrb[0].mxu0 %v446
          %v482 = vpop.f32.mrb[0].mxu0
          %v483 = vadd.f32 %v430, %v482
          %v484 = vpop.f32.mrb[0].mxu0
          %v485 = vpop.f32.mrb[0].mxu0
          %v486 = vpop.f32.mrb[0].mxu0
          %487 = vdwg.mxu0
          %v488 = vpack.c.bf16 %v483, %v483
          %v489 = vlaneseq
          %v490 = vshrl.u32 %v489, 7
          %s491 = smul.u32 %s35, 8
          %v492 = vstv %s491
          %v493 = vadd.s32 %v490, %v492
          %v494 = vlaneseq
          %v495 = vand.u32 %v494, 127
          %s496 = smul.u32 %s36, 8
          %v497 = vstv %s496
          %v498 = vadd.s32 %v495, %v497
          %vm499 = vcmp.le.s32.totalorder %v498, %v493
          %v500 = vld [vmem:[%s359] sm:$0xff]
          %v501 = vpack.c.bf16 %v500, %v500
          %v502 = vld [vmem:[#allocation11] sm:$0xf]
          %v503 = vld [vmem:[#allocation11 + $0x4] sm:$0xf]
          %v504 = vld [vmem:[#allocation11 + $0x8] sm:$0xf]
          %v505 = vld [vmem:[#allocation11 + $0xc] sm:$0xf]
          %v506 = vld [vmem:[%s3] sm:$0x1]
          %v508 = vlaneseq
          %v509 = vshrl.u32 %v508, 7
          %v510 = vsub.s32 0, %v509
          %v511 = vrot.slane %v506, %v510
          %v517 = vunpack.c.l.b16 %v502
          %v518 = vunpack.c.l.b16 %v503
          %v519 = vunpack.c.l.b16 %v504
          %v520 = vunpack.c.l.b16 %v505
          %v521 = vpack.c.b16 %v518, %v517
          %v522 = vpack.c.b16 %v520, %v519
          %v526 = vsel %vm444, %v501, 0
          %528 = vmatprep.subr.bf16.mxu0 0
          %529 = vmatpush1.bf16.msra.mxu0 %v521
          %530 = vmatprep.subr.bf16.mxu0 0
          %531 = vmatpush1.bf16.msra.mxu0 %v522
          %532 = vmatprep.subr.bf16.mxu0 0
          %533 = vmatpush1.bf16.msra.mxu0 0
          %534 = vmatprep.subr.bf16.mxu0 0
          %535 = vmatpush1.bf16.msra.mxu0 0
          %536 = vmatprep.subr.bf16.mxu0 0
          %537 = vmatpush1.bf16.msra.mxu0 0
          %538 = vmatprep.subr.bf16.mxu0 0
          %539 = vmatpush1.bf16.msra.mxu0 0
          %540 = vmatprep.subr.bf16.mxu0 0
          %541 = vmatpush1.bf16.msra.mxu0 0
          %542 = vmatprep.subr.bf16.mxu0 0
          %543 = vmatpush1.bf16.msra.mxu0 0
          %544 = vmatprep.subr.bf16.mxu0 0
          %545 = vmatpush1.bf16.msra.mxu0 0
          %546 = vmatprep.subr.bf16.mxu0 0
          %547 = vmatpush1.bf16.msra.mxu0 0
          %548 = vmatprep.subr.bf16.mxu0 0
          %549 = vmatpush1.bf16.msra.mxu0 0
          %550 = vmatprep.subr.bf16.mxu0 0
          %551 = vmatpush1.bf16.msra.mxu0 0
          %552 = vmatprep.subr.bf16.mxu0 0
          %553 = vmatpush1.bf16.msra.mxu0 0
          %554 = vmatprep.subr.bf16.mxu0 0
          %555 = vmatpush1.bf16.msra.mxu0 0
          %556 = vmatprep.subr.bf16.mxu0 0
          %557 = vmatpush1.bf16.msra.mxu0 0
          %558 = vmatprep.subr.bf16.mxu0 0
          %559 = vmatpush1.bf16.msra.mxu0 0
          %560 = vmatprep.mubr.bf16.mxu0 0
          %561 = vmatmul.mubr.bf16.gmra.mrb[0].mxu0 %v526
          %v562 = vpop.f32.mrb[0].mxu0
          %v563 = vadd.f32 %v511, %v562
          %v564 = vpop.f32.mrb[0].mxu0
          %v565 = vpop.f32.mrb[0].mxu0
          %v566 = vpop.f32.mrb[0].mxu0
          %567 = vdwg.mxu0
          %v568 = vmul.f32 %v563, 0.35355338
          %v569 = vpack.c.bf16 %v568, %v568
          %vm570 = vcmask 257024
          %571 = vst.msk [vmem:[#allocation2] sm:$0xf] %vm570, %v569
          %vm572 = vcmask 64512
          %v574 = vsel %vm572, %v569, 0
          %v577 = vsel %vm572, %v488, 0
          %579 = vmatprep.subr.bf16.mxu0 0
          %580 = vmatpush1.bf16.xpose.msra.mxu0 %v577
          %581 = vmatprep.subr.bf16.mxu0 0
          %582 = vmatpush1.bf16.xpose.msra.mxu0 0
          %583 = vmatprep.subr.bf16.mxu0 0
          %584 = vmatpush1.bf16.xpose.msra.mxu0 0
          %585 = vmatprep.subr.bf16.mxu0 0
          %586 = vmatpush1.bf16.xpose.msra.mxu0 0
          %587 = vmatprep.subr.bf16.mxu0 0
          %588 = vmatpush1.bf16.xpose.msra.mxu0 0
          %589 = vmatprep.subr.bf16.mxu0 0
          %590 = vmatpush1.bf16.xpose.msra.mxu0 0
          %591 = vmatprep.subr.bf16.mxu0 0
          %592 = vmatpush1.bf16.xpose.msra.mxu0 0
          %593 = vmatprep.subr.bf16.mxu0 0
          %594 = vmatpush1.bf16.xpose.msra.mxu0 0
          %595 = vmatprep.subr.bf16.mxu0 0
          %596 = vmatpush1.bf16.xpose.msra.mxu0 0
          %597 = vmatprep.subr.bf16.mxu0 0
          %598 = vmatpush1.bf16.xpose.msra.mxu0 0
          %599 = vmatprep.subr.bf16.mxu0 0
          %600 = vmatpush1.bf16.xpose.msra.mxu0 0
          %601 = vmatprep.subr.bf16.mxu0 0
          %602 = vmatpush1.bf16.xpose.msra.mxu0 0
          %603 = vmatprep.subr.bf16.mxu0 0
          %604 = vmatpush1.bf16.xpose.msra.mxu0 0
          %605 = vmatprep.subr.bf16.mxu0 0
          %606 = vmatpush1.bf16.xpose.msra.mxu0 0
          %607 = vmatprep.subr.bf16.mxu0 0
          %608 = vmatpush1.bf16.xpose.msra.mxu0 0
          %609 = vmatprep.subr.bf16.mxu0 0
          %610 = vmatpush1.bf16.xpose.msra.mxu0 0
          %611 = vmatprep.mubr.bf16.mxu0 0
          %612 = vmatmul.mubr.bf16.gmra.mrb[0].mxu0 %v574
          %v613 = vpop.f32.mrb[0].mxu0
          %v614 = vadd.f32 0.0, %v613
          %v615 = vpop.f32.mrb[0].mxu0
          %v616 = vpop.f32.mrb[0].mxu0
          %v617 = vpop.f32.mrb[0].mxu0
          %618 = vdwg.mxu0
          %v619 = vsel %vm499, %v614, -inf
          %v620 = vsel %vm572, %v619, -inf
          %621 = vmax.xlane.f32.xlu0 %v620
          %v622 = vpop.xlane.xlu0 %621
          %v623 = vsub.f32 %v619, %v622
          %v624 = vmul.f32 %v623, 1.442695
          %v625 = vpow.pop %v624
          %vm626 = vcmask 7168
          %627 = vst.msk [vmem:[#allocation3] sm:$0xff] %vm626, %v622
          %v628 = vsel %vm572, %v625, 0.0
          %629 = vadd.xlane.f32.xlu0 %v628
          %v630 = vpop.xlane.xlu0 %629
          %631 = vst.msk [vmem:[#allocation4] sm:$0xff] %vm626, %v630
          %v632 = vpack.c.bf16 %v625, %v625
          %634 = vrot.lane.b32.xlu0 %v488, 96
          %v635 = vpop.permute.xlu0 %634
          %v637 = vsel %vm572, %v632, 0
          %vm639 = vcmask 1043456
          %v641 = vsel %vm639, %v635, 0
          %643 = vmatprep.subr.bf16.mxu0 0
          %644 = vmatpush1.bf16.msra.mxu0 %v641
          %645 = vmatprep.subr.bf16.mxu0 0
          %646 = vmatpush1.bf16.msra.mxu0 0
          %647 = vmatprep.subr.bf16.mxu0 0
          %648 = vmatpush1.bf16.msra.mxu0 0
          %649 = vmatprep.subr.bf16.mxu0 0
          %650 = vmatpush1.bf16.msra.mxu0 0
          %651 = vmatprep.subr.bf16.mxu0 0
          %652 = vmatpush1.bf16.msra.mxu0 0
          %653 = vmatprep.subr.bf16.mxu0 0
          %654 = vmatpush1.bf16.msra.mxu0 0
          %655 = vmatprep.subr.bf16.mxu0 0
          %656 = vmatpush1.bf16.msra.mxu0 0
          %657 = vmatprep.subr.bf16.mxu0 0
          %658 = vmatpush1.bf16.msra.mxu0 0
          %659 = vmatprep.subr.bf16.mxu0 0
          %660 = vmatpush1.bf16.msra.mxu0 0
          %661 = vmatprep.subr.bf16.mxu0 0
          %662 = vmatpush1.bf16.msra.mxu0 0
          %663 = vmatprep.subr.bf16.mxu0 0
          %664 = vmatpush1.bf16.msra.mxu0 0
          %665 = vmatprep.subr.bf16.mxu0 0
          %666 = vmatpush1.bf16.msra.mxu0 0
          %667 = vmatprep.subr.bf16.mxu0 0
          %668 = vmatpush1.bf16.msra.mxu0 0
          %669 = vmatprep.subr.bf16.mxu0 0
          %670 = vmatpush1.bf16.msra.mxu0 0
          %671 = vmatprep.subr.bf16.mxu0 0
          %672 = vmatpush1.bf16.msra.mxu0 0
          %673 = vmatprep.subr.bf16.mxu0 0
          %674 = vmatpush1.bf16.msra.mxu0 0
          %675 = vmatprep.mubr.bf16.mxu0 0
          %676 = vmatmul.mubr.bf16.gmra.mrb[0].mxu0 %v637
          %v677 = vpop.f32.mrb[0].mxu0
          %v678 = vadd.f32 0.0, %v677
          %v679 = vpop.f32.mrb[0].mxu0
          %v680 = vpop.f32.mrb[0].mxu0
          %v681 = vpop.f32.mrb[0].mxu0
          %682 = vdwg.mxu0
          %683 = vst.msk [vmem:[#allocation5] sm:$0xff] %vm572, %v678
          %685 = vrot.lane.b32.xlu0 %v569, 120
          %v686 = vpop.permute.xlu0 %685
          %687 = vrot.lane.b32.xlu0 %v488, 120
          %v688 = vpop.permute.xlu0 %687
          %v690 = vsel %vm572, %v686, 0
          %v693 = vsel %vm572, %v688, 0
          %695 = vmatprep.subr.bf16.mxu0 0
          %696 = vmatpush1.bf16.xpose.msra.mxu0 %v693
          %697 = vmatprep.subr.bf16.mxu0 0
          %698 = vmatpush1.bf16.xpose.msra.mxu0 0
          %699 = vmatprep.subr.bf16.mxu0 0
          %700 = vmatpush1.bf16.xpose.msra.mxu0 0
          %701 = vmatprep.subr.bf16.mxu0 0
          %702 = vmatpush1.bf16.xpose.msra.mxu0 0
          %703 = vmatprep.subr.bf16.mxu0 0
          %704 = vmatpush1.bf16.xpose.msra.mxu0 0
          %705 = vmatprep.subr.bf16.mxu0 0
          %706 = vmatpush1.bf16.xpose.msra.mxu0 0
          %707 = vmatprep.subr.bf16.mxu0 0
          %708 = vmatpush1.bf16.xpose.msra.mxu0 0
          %709 = vmatprep.subr.bf16.mxu0 0
          %710 = vmatpush1.bf16.xpose.msra.mxu0 0
          %711 = vmatprep.subr.bf16.mxu0 0
          %712 = vmatpush1.bf16.xpose.msra.mxu0 0
          %713 = vmatprep.subr.bf16.mxu0 0
          %714 = vmatpush1.bf16.xpose.msra.mxu0 0
          %715 = vmatprep.subr.bf16.mxu0 0
          %716 = vmatpush1.bf16.xpose.msra.mxu0 0
          %717 = vmatprep.subr.bf16.mxu0 0
          %718 = vmatpush1.bf16.xpose.msra.mxu0 0
          %719 = vmatprep.subr.bf16.mxu0 0
          %720 = vmatpush1.bf16.xpose.msra.mxu0 0
          %721 = vmatprep.subr.bf16.mxu0 0
          %722 = vmatpush1.bf16.xpose.msra.mxu0 0
          %723 = vmatprep.subr.bf16.mxu0 0
          %724 = vmatpush1.bf16.xpose.msra.mxu0 0
          %725 = vmatprep.subr.bf16.mxu0 0
          %726 = vmatpush1.bf16.xpose.msra.mxu0 0
          %727 = vmatprep.mubr.bf16.mxu0 0
          %728 = vmatmul.mubr.bf16.gmra.mrb[0].mxu0 %v690
          %v729 = vpop.f32.mrb[0].mxu0
          %v730 = vadd.f32 0.0, %v729
          %v731 = vpop.f32.mrb[0].mxu0
          %v732 = vpop.f32.mrb[0].mxu0
          %v733 = vpop.f32.mrb[0].mxu0
          %734 = vdwg.mxu0
          %v735 = vsel %vm499, %v730, -inf
          %v736 = vsel %vm572, %v735, -inf
          %737 = vmax.xlane.f32.xlu0 %v736
          %v738 = vpop.xlane.xlu0 %737
          %v739 = vsub.f32 %v735, %v738
          %v740 = vmul.f32 %v739, 1.442695
          %v741 = vpow.pop %v740
          %vm742 = vcmask 15368
          %743 = vst.msk [vmem:[#allocation3] sm:$0xff] %vm742, %v738
          %v744 = vsel %vm572, %v741, 0.0
          %745 = vadd.xlane.f32.xlu0 %v744
          %v746 = vpop.xlane.xlu0 %745
          %747 = vst.msk [vmem:[#allocation4] sm:$0xff] %vm742, %v746
          %v748 = vpack.c.bf16 %v741, %v741
          %749 = vrot.lane.b32.xlu0 %v488, 88
          %v750 = vpop.permute.xlu0 %749
          %v752 = vsel %vm572, %v748, 0
          %v755 = vsel %vm639, %v750, 0
          %757 = vmatprep.subr.bf16.mxu0 0
          %758 = vmatpush1.bf16.msra.mxu0 %v755
          %759 = vmatprep.subr.bf16.mxu0 0
          %760 = vmatpush1.bf16.msra.mxu0 0
          %761 = vmatprep.subr.bf16.mxu0 0
          %762 = vmatpush1.bf16.msra.mxu0 0
          %763 = vmatprep.subr.bf16.mxu0 0
          %764 = vmatpush1.bf16.msra.mxu0 0
          %765 = vmatprep.subr.bf16.mxu0 0
          %766 = vmatpush1.bf16.msra.mxu0 0
          %767 = vmatprep.subr.bf16.mxu0 0
          %768 = vmatpush1.bf16.msra.mxu0 0
          %769 = vmatprep.subr.bf16.mxu0 0
          %770 = vmatpush1.bf16.msra.mxu0 0
          %771 = vmatprep.subr.bf16.mxu0 0
          %772 = vmatpush1.bf16.msra.mxu0 0
          %773 = vmatprep.subr.bf16.mxu0 0
          %774 = vmatpush1.bf16.msra.mxu0 0
          %775 = vmatprep.subr.bf16.mxu0 0
          %776 = vmatpush1.bf16.msra.mxu0 0
          %777 = vmatprep.subr.bf16.mxu0 0
          %778 = vmatpush1.bf16.msra.mxu0 0
          %779 = vmatprep.subr.bf16.mxu0 0
          %780 = vmatpush1.bf16.msra.mxu0 0
          %781 = vmatprep.subr.bf16.mxu0 0
          %782 = vmatpush1.bf16.msra.mxu0 0
          %783 = vmatprep.subr.bf16.mxu0 0
          %784 = vmatpush1.bf16.msra.mxu0 0
          %785 = vmatprep.subr.bf16.mxu0 0
          %786 = vmatpush1.bf16.msra.mxu0 0
          %787 = vmatprep.subr.bf16.mxu0 0
          %788 = vmatpush1.bf16.msra.mxu0 0
          %789 = vmatprep.mubr.bf16.mxu0 0
          %790 = vmatmul.mubr.bf16.gmra.mrb[0].mxu0 %v752
          %v791 = vpop.f32.mrb[0].mxu0
          %v792 = vadd.f32 0.0, %v791
          %v793 = vpop.f32.mrb[0].mxu0
          %v794 = vpop.f32.mrb[0].mxu0
          %v795 = vpop.f32.mrb[0].mxu0
          %796 = vdwg.mxu0
          %798 = vrot.lane.b32.xlu0 %v792, 8
          %v799 = vpop.permute.xlu0 %798
          %vm801 = vcmask 130112
          %802 = vst.msk [vmem:[#allocation5] sm:$0xff] %vm801, %v799
          %803 = vrot.lane.b32.xlu0 %v569, 112
          %v804 = vpop.permute.xlu0 %803
          %805 = vrot.lane.b32.xlu0 %v488, 112
          %v806 = vpop.permute.xlu0 %805
          %v808 = vsel %vm572, %v804, 0
          %v811 = vsel %vm572, %v806, 0
          %813 = vmatprep.subr.bf16.mxu0 0
          %814 = vmatpush1.bf16.xpose.msra.mxu0 %v811
          %815 = vmatprep.subr.bf16.mxu0 0
          %816 = vmatpush1.bf16.xpose.msra.mxu0 0
          %817 = vmatprep.subr.bf16.mxu0 0
          %818 = vmatpush1.bf16.xpose.msra.mxu0 0
          %819 = vmatprep.subr.bf16.mxu0 0
          %820 = vmatpush1.bf16.xpose.msra.mxu0 0
          %821 = vmatprep.subr.bf16.mxu0 0
          %822 = vmatpush1.bf16.xpose.msra.mxu0 0
          %823 = vmatprep.subr.bf16.mxu0 0
          %824 = vmatpush1.bf16.xpose.msra.mxu0 0
          %825 = vmatprep.subr.bf16.mxu0 0
          %826 = vmatpush1.bf16.xpose.msra.mxu0 0
          %827 = vmatprep.subr.bf16.mxu0 0
          %828 = vmatpush1.bf16.xpose.msra.mxu0 0
          %829 = vmatprep.subr.bf16.mxu0 0
          %830 = vmatpush1.bf16.xpose.msra.mxu0 0
          %831 = vmatprep.subr.bf16.mxu0 0
          %832 = vmatpush1.bf16.xpose.msra.mxu0 0
          %833 = vmatprep.subr.bf16.mxu0 0
          %834 = vmatpush1.bf16.xpose.msra.mxu0 0
          %835 = vmatprep.subr.bf16.mxu0 0
          %836 = vmatpush1.bf16.xpose.msra.mxu0 0
          %837 = vmatprep.subr.bf16.mxu0 0
          %838 = vmatpush1.bf16.xpose.msra.mxu0 0
          %839 = vmatprep.subr.bf16.mxu0 0
          %840 = vmatpush1.bf16.xpose.msra.mxu0 0
          %841 = vmatprep.subr.bf16.mxu0 0
          %842 = vmatpush1.bf16.xpose.msra.mxu0 0
          %843 = vmatprep.subr.bf16.mxu0 0
          %844 = vmatpush1.bf16.xpose.msra.mxu0 0
          %845 = vmatprep.mubr.bf16.mxu0 0
          %846 = vmatmul.mubr.bf16.gmra.mrb[0].mxu0 %v808
          %v847 = vpop.f32.mrb[0].mxu0
          %v848 = vadd.f32 0.0, %v847
          %v849 = vpop.f32.mrb[0].mxu0
          %v850 = vpop.f32.mrb[0].mxu0
          %v851 = vpop.f32.mrb[0].mxu0
          %852 = vdwg.mxu0
          %v853 = vsel %vm499, %v848, -inf
          %v854 = vsel %vm572, %v853, -inf
          %855 = vmax.xlane.f32.xlu0 %v854
          %v856 = vpop.xlane.xlu0 %855
          %v857 = vsub.f32 %v853, %v856
          %v858 = vmul.f32 %v857, 1.442695
          %v859 = vpow.pop %v858
          %vm860 = vcmask 23568
          %861 = vst.msk [vmem:[#allocation3] sm:$0xff] %vm860, %v856
          %v862 = vsel %vm572, %v859, 0.0
          %863 = vadd.xlane.f32.xlu0 %v862
          %v864 = vpop.xlane.xlu0 %863
          %865 = vst.msk [vmem:[#allocation4] sm:$0xff] %vm860, %v864
          %v866 = vpack.c.bf16 %v859, %v859
          %867 = vrot.lane.b32.xlu0 %v488, 80
          %v868 = vpop.permute.xlu0 %867
          %v870 = vsel %vm572, %v866, 0
          %v873 = vsel %vm639, %v868, 0
          %875 = vmatprep.subr.bf16.mxu0 0
          %876 = vmatpush1.bf16.msra.mxu0 %v873
          %877 = vmatprep.subr.bf16.mxu0 0
          %878 = vmatpush1.bf16.msra.mxu0 0
          %879 = vmatprep.subr.bf16.mxu0 0
          %880 = vmatpush1.bf16.msra.mxu0 0
          %881 = vmatprep.subr.bf16.mxu0 0
          %882 = vmatpush1.bf16.msra.mxu0 0
          %883 = vmatprep.subr.bf16.mxu0 0
          %884 = vmatpush1.bf16.msra.mxu0 0
          %885 = vmatprep.subr.bf16.mxu0 0
          %886 = vmatpush1.bf16.msra.mxu0 0
          %887 = vmatprep.subr.bf16.mxu0 0
          %888 = vmatpush1.bf16.msra.mxu0 0
          %889 = vmatprep.subr.bf16.mxu0 0
          %890 = vmatpush1.bf16.msra.mxu0 0
          %891 = vmatprep.subr.bf16.mxu0 0
          %892 = vmatpush1.bf16.msra.mxu0 0
          %893 = vmatprep.subr.bf16.mxu0 0
          %894 = vmatpush1.bf16.msra.mxu0 0
          %895 = vmatprep.subr.bf16.mxu0 0
          %896 = vmatpush1.bf16.msra.mxu0 0
          %897 = vmatprep.subr.bf16.mxu0 0
          %898 = vmatpush1.bf16.msra.mxu0 0
          %899 = vmatprep.subr.bf16.mxu0 0
          %900 = vmatpush1.bf16.msra.mxu0 0
          %901 = vmatprep.subr.bf16.mxu0 0
          %902 = vmatpush1.bf16.msra.mxu0 0
          %903 = vmatprep.subr.bf16.mxu0 0
          %904 = vmatpush1.bf16.msra.mxu0 0
          %905 = vmatprep.subr.bf16.mxu0 0
          %906 = vmatpush1.bf16.msra.mxu0 0
          %907 = vmatprep.mubr.bf16.mxu0 0
          %908 = vmatmul.mubr.bf16.gmra.mrb[0].mxu0 %v870
          %v909 = vpop.f32.mrb[0].mxu0
          %v910 = vadd.f32 0.0, %v909
          %v911 = vpop.f32.mrb[0].mxu0
          %v912 = vpop.f32.mrb[0].mxu0
          %v913 = vpop.f32.mrb[0].mxu0
          %914 = vdwg.mxu0
          %916 = vrot.lane.b32.xlu0 %v910, 16
          %v917 = vpop.permute.xlu0 %916
          %vm919 = vcmask 195712
          %920 = vst.msk [vmem:[#allocation5] sm:$0xff] %vm919, %v917
          %921 = vrot.lane.b32.xlu0 %v569, 104
          %v922 = vpop.permute.xlu0 %921
          %923 = vrot.lane.b32.xlu0 %v488, 104
          %v924 = vpop.permute.xlu0 %923
          %v926 = vsel %vm572, %v922, 0
          %v929 = vsel %vm572, %v924, 0
          %931 = vmatprep.subr.bf16.mxu0 0
          %932 = vmatpush1.bf16.xpose.msra.mxu0 %v929
          %933 = vmatprep.subr.bf16.mxu0 0
          %934 = vmatpush1.bf16.xpose.msra.mxu0 0
          %935 = vmatprep.subr.bf16.mxu0 0
          %936 = vmatpush1.bf16.xpose.msra.mxu0 0
          %937 = vmatprep.subr.bf16.mxu0 0
          %938 = vmatpush1.bf16.xpose.msra.mxu0 0
          %939 = vmatprep.subr.bf16.mxu0 0
          %940 = vmatpush1.bf16.xpose.msra.mxu0 0
          %941 = vmatprep.subr.bf16.mxu0 0
          %942 = vmatpush1.bf16.xpose.msra.mxu0 0
          %943 = vmatprep.subr.bf16.mxu0 0
          %944 = vmatpush1.bf16.xpose.msra.mxu0 0
          %945 = vmatprep.subr.bf16.mxu0 0
          %946 = vmatpush1.bf16.xpose.msra.mxu0 0
          %947 = vmatprep.subr.bf16.mxu0 0
          %948 = vmatpush1.bf16.xpose.msra.mxu0 0
          %949 = vmatprep.subr.bf16.mxu0 0
          %950 = vmatpush1.bf16.xpose.msra.mxu0 0
          %951 = vmatprep.subr.bf16.mxu0 0
          %952 = vmatpush1.bf16.xpose.msra.mxu0 0
          %953 = vmatprep.subr.bf16.mxu0 0
          %954 = vmatpush1.bf16.xpose.msra.mxu0 0
          %955 = vmatprep.subr.bf16.mxu0 0
          %956 = vmatpush1.bf16.xpose.msra.mxu0 0
          %957 = vmatprep.subr.bf16.mxu0 0
          %958 = vmatpush1.bf16.xpose.msra.mxu0 0
          %959 = vmatprep.subr.bf16.mxu0 0
          %960 = vmatpush1.bf16.xpose.msra.mxu0 0
          %961 = vmatprep.subr.bf16.mxu0 0
          %962 = vmatpush1.bf16.xpose.msra.mxu0 0
          %963 = vmatprep.mubr.bf16.mxu0 0
          %964 = vmatmul.mubr.bf16.gmra.mrb[0].mxu0 %v926
          %v965 = vpop.f32.mrb[0].mxu0
          %v966 = vadd.f32 0.0, %v965
          %v967 = vpop.f32.mrb[0].mxu0
          %v968 = vpop.f32.mrb[0].mxu0
          %v969 = vpop.f32.mrb[0].mxu0
          %970 = vdwg.mxu0
          %v971 = vsel %vm499, %v966, -inf
          %v972 = vsel %vm572, %v971, -inf
          %973 = vmax.xlane.f32.xlu0 %v972
          %v974 = vpop.xlane.xlu0 %973
          %v975 = vsub.f32 %v971, %v974
          %v976 = vmul.f32 %v975, 1.442695
          %v977 = vpow.pop %v976
          %vm978 = vcmask 31768
          %979 = vst.msk [vmem:[#allocation3] sm:$0xff] %vm978, %v974
          %v980 = vsel %vm572, %v977, 0.0
          %981 = vadd.xlane.f32.xlu0 %v980
          %v982 = vpop.xlane.xlu0 %981
          %983 = vst.msk [vmem:[#allocation4] sm:$0xff] %vm978, %v982
          %v984 = vpack.c.bf16 %v977, %v977
          %985 = vrot.lane.b32.xlu0 %v488, 72
          %v986 = vpop.permute.xlu0 %985
          %v988 = vsel %vm572, %v984, 0
          %v991 = vsel %vm639, %v986, 0
          %993 = vmatprep.subr.bf16.mxu0 0
          %994 = vmatpush1.bf16.msra.mxu0 %v991
          %995 = vmatprep.subr.bf16.mxu0 0
          %996 = vmatpush1.bf16.msra.mxu0 0
          %997 = vmatprep.subr.bf16.mxu0 0
          %998 = vmatpush1.bf16.msra.mxu0 0
          %999 = vmatprep.subr.bf16.mxu0 0
          %1000 = vmatpush1.bf16.msra.mxu0 0
          %1001 = vmatprep.subr.bf16.mxu0 0
          %1002 = vmatpush1.bf16.msra.mxu0 0
          %1003 = vmatprep.subr.bf16.mxu0 0
          %1004 = vmatpush1.bf16.msra.mxu0 0
          %1005 = vmatprep.subr.bf16.mxu0 0
          %1006 = vmatpush1.bf16.msra.mxu0 0
          %1007 = vmatprep.subr.bf16.mxu0 0
          %1008 = vmatpush1.bf16.msra.mxu0 0
          %1009 = vmatprep.subr.bf16.mxu0 0
          %1010 = vmatpush1.bf16.msra.mxu0 0
          %1011 = vmatprep.subr.bf16.mxu0 0
          %1012 = vmatpush1.bf16.msra.mxu0 0
          %1013 = vmatprep.subr.bf16.mxu0 0
          %1014 = vmatpush1.bf16.msra.mxu0 0
          %1015 = vmatprep.subr.bf16.mxu0 0
          %1016 = vmatpush1.bf16.msra.mxu0 0
          %1017 = vmatprep.subr.bf16.mxu0 0
          %1018 = vmatpush1.bf16.msra.mxu0 0
          %1019 = vmatprep.subr.bf16.mxu0 0
          %1020 = vmatpush1.bf16.msra.mxu0 0
          %1021 = vmatprep.subr.bf16.mxu0 0
          %1022 = vmatpush1.bf16.msra.mxu0 0
          %1023 = vmatprep.subr.bf16.mxu0 0
          %1024 = vmatpush1.bf16.msra.mxu0 0
          %1025 = vmatprep.mubr.bf16.mxu0 0
          %1026 = vmatmul.mubr.bf16.gmra.mrb[0].mxu0 %v988
          %v1027 = vpop.f32.mrb[0].mxu0
          %v1028 = vadd.f32 0.0, %v1027
          %v1029 = vpop.f32.mrb[0].mxu0
          %v1030 = vpop.f32.mrb[0].mxu0
          %v1031 = vpop.f32.mrb[0].mxu0
          %1032 = vdwg.mxu0
          %1034 = vrot.lane.b32.xlu0 %v1028, 24
          %v1035 = vpop.permute.xlu0 %1034
          %vm1037 = vcmask 261312
          %1038 = vst.msk [vmem:[#allocation5] sm:$0xff] %vm1037, %v1035
        $region72: #{tpu_custom_call.1} parent=51 // pred_fallthru
          _
        %p1039 = scmp.gt.s32.totalorder %s36, 0
        %s1040 = smul.u32 %s36, 8
        %s1041 = smul.u32 %s35, 8
        %s1042 = sadd.s32 %s1041, 7
        %p1043 = scmp.le.s32.totalorder %s1040, %s1042
        %p1044 = pnand %p1039, %p1043
        %p1045 = pneg %p1044
        // Predicated region
        $region73: #{tpu_custom_call.1} parent=51 // pred_check
          _
        $region74: #{tpu_custom_call.1} parent=51 // pred_check_branch
          %1047 = sbr.rel (%p1044) target = $region76
        $region75: #{tpu_custom_call.1} parent=51 // pred_region
          %v1048 = vld [vmem:[%s368] sm:$0xff]
          %v1049 = vpack.c.bf16 %v1048, %v1048
          %v1050 = vld [vmem:[#allocation12] sm:$0xf]
          %v1051 = vld [vmem:[#allocation12 + $0x4] sm:$0xf]
          %v1052 = vld [vmem:[#allocation12 + $0x8] sm:$0xf]
          %v1053 = vld [vmem:[#allocation12 + $0xc] sm:$0xf]
          %v1054 = vld [vmem:[%s5] sm:$0x1]
          %v1056 = vlaneseq
          %v1057 = vshrl.u32 %v1056, 7
          %v1058 = vsub.s32 0, %v1057
          %v1059 = vrot.slane %v1054, %v1058
          %v1065 = vunpack.c.l.b16 %v1050
          %v1066 = vunpack.c.l.b16 %v1051
          %v1067 = vunpack.c.l.b16 %v1052
          %v1068 = vunpack.c.l.b16 %v1053
          %v1069 = vpack.c.b16 %v1066, %v1065
          %v1070 = vpack.c.b16 %v1068, %v1067
          %vm1073 = vcmask 261120
          %v1075 = vsel %vm1073, %v1049, 0
          %1077 = vmatprep.subr.bf16.mxu0 0
          %1078 = vmatpush1.bf16.msra.mxu0 %v1069
          %1079 = vmatprep.subr.bf16.mxu0 0
          %1080 = vmatpush1.bf16.msra.mxu0 %v1070
          %1081 = vmatprep.subr.bf16.mxu0 0
          %1082 = vmatpush1.bf16.msra.mxu0 0
          %1083 = vmatprep.subr.bf16.mxu0 0
          %1084 = vmatpush1.bf16.msra.mxu0 0
          %1085 = vmatprep.subr.bf16.mxu0 0
          %1086 = vmatpush1.bf16.msra.mxu0 0
          %1087 = vmatprep.subr.bf16.mxu0 0
          %1088 = vmatpush1.bf16.msra.mxu0 0
          %1089 = vmatprep.subr.bf16.mxu0 0
          %1090 = vmatpush1.bf16.msra.mxu0 0
          %1091 = vmatprep.subr.bf16.mxu0 0
          %1092 = vmatpush1.bf16.msra.mxu0 0
          %1093 = vmatprep.subr.bf16.mxu0 0
          %1094 = vmatpush1.bf16.msra.mxu0 0
          %1095 = vmatprep.subr.bf16.mxu0 0
          %1096 = vmatpush1.bf16.msra.mxu0 0
          %1097 = vmatprep.subr.bf16.mxu0 0
          %1098 = vmatpush1.bf16.msra.mxu0 0
          %1099 = vmatprep.subr.bf16.mxu0 0
          %1100 = vmatpush1.bf16.msra.mxu0 0
          %1101 = vmatprep.subr.bf16.mxu0 0
          %1102 = vmatpush1.bf16.msra.mxu0 0
          %1103 = vmatprep.subr.bf16.mxu0 0
          %1104 = vmatpush1.bf16.msra.mxu0 0
          %1105 = vmatprep.subr.bf16.mxu0 0
          %1106 = vmatpush1.bf16.msra.mxu0 0
          %1107 = vmatprep.subr.bf16.mxu0 0
          %1108 = vmatpush1.bf16.msra.mxu0 0
          %1109 = vmatprep.mubr.bf16.mxu0 0
          %1110 = vmatmul.mubr.bf16.gmra.mrb[0].mxu0 %v1075
          %v1111 = vpop.f32.mrb[0].mxu0
          %v1112 = vadd.f32 %v1059, %v1111
          %v1113 = vpop.f32.mrb[0].mxu0
          %v1114 = vpop.f32.mrb[0].mxu0
          %v1115 = vpop.f32.mrb[0].mxu0
          %1116 = vdwg.mxu0
          %v1117 = vpack.c.bf16 %v1112, %v1112
          %v1118 = vlaneseq
          %v1119 = vshrl.u32 %v1118, 7
          %v1120 = vstv %s1041
          %v1121 = vadd.s32 %v1119, %v1120
          %v1122 = vlaneseq
          %v1123 = vand.u32 %v1122, 127
          %v1124 = vstv %s1040
          %v1125 = vadd.s32 %v1123, %v1124
          %vm1126 = vcmp.le.s32.totalorder %v1125, %v1121
          %v1127 = vld [vmem:[#allocation2] sm:$0xf]
          %vm1128 = vcmask 64512
          %v1130 = vsel %vm1128, %v1127, 0
          %v1133 = vsel %vm1128, %v1117, 0
          %1135 = vmatprep.subr.bf16.mxu0 0
          %1136 = vmatpush1.bf16.xpose.msra.mxu0 %v1133
          %1137 = vmatprep.subr.bf16.mxu0 0
          %1138 = vmatpush1.bf16.xpose.msra.mxu0 0
          %1139 = vmatprep.subr.bf16.mxu0 0
          %1140 = vmatpush1.bf16.xpose.msra.mxu0 0
          %1141 = vmatprep.subr.bf16.mxu0 0
          %1142 = vmatpush1.bf16.xpose.msra.mxu0 0
          %1143 = vmatprep.subr.bf16.mxu0 0
          %1144 = vmatpush1.bf16.xpose.msra.mxu0 0
          %1145 = vmatprep.subr.bf16.mxu0 0
          %1146 = vmatpush1.bf16.xpose.msra.mxu0 0
          %1147 = vmatprep.subr.bf16.mxu0 0
          %1148 = vmatpush1.bf16.xpose.msra.mxu0 0
          %1149 = vmatprep.subr.bf16.mxu0 0
          %1150 = vmatpush1.bf16.xpose.msra.mxu0 0
          %1151 = vmatprep.subr.bf16.mxu0 0
          %1152 = vmatpush1.bf16.xpose.msra.mxu0 0
          %1153 = vmatprep.subr.bf16.mxu0 0
          %1154 = vmatpush1.bf16.xpose.msra.mxu0 0
          %1155 = vmatprep.subr.bf16.mxu0 0
          %1156 = vmatpush1.bf16.xpose.msra.mxu0 0
          %1157 = vmatprep.subr.bf16.mxu0 0
          %1158 = vmatpush1.bf16.xpose.msra.mxu0 0
          %1159 = vmatprep.subr.bf16.mxu0 0
          %1160 = vmatpush1.bf16.xpose.msra.mxu0 0
          %1161 = vmatprep.subr.bf16.mxu0 0
          %1162 = vmatpush1.bf16.xpose.msra.mxu0 0
          %1163 = vmatprep.subr.bf16.mxu0 0
          %1164 = vmatpush1.bf16.xpose.msra.mxu0 0
          %1165 = vmatprep.subr.bf16.mxu0 0
          %1166 = vmatpush1.bf16.xpose.msra.mxu0 0
          %1167 = vmatprep.mubr.bf16.mxu0 0
          %1168 = vmatmul.mubr.bf16.gmra.mrb[0].mxu0 %v1130
          %v1169 = vpop.f32.mrb[0].mxu0
          %v1170 = vadd.f32 0.0, %v1169
          %v1171 = vpop.f32.mrb[0].mxu0
          %v1172 = vpop.f32.mrb[0].mxu0
          %v1173 = vpop.f32.mrb[0].mxu0
          %1174 = vdwg.mxu0
          %v1175 = vsel %vm1126, %v1170, -inf
          %v1176 = vsel %vm1128, %v1175, -inf
          %1177 = vmax.xlane.f32.xlu0 %v1176
          %v1178 = vpop.xlane.xlu0 %1177
          %v1179 = vld [vmem:[#allocation3] sm:$0xff]
          %v1180 = vmax.f32 %v1179, %v1178
          %v1181 = vsub.f32 %v1179, %v1180
          %v1182 = vmul.f32 %v1181, 1.442695
          %v1183 = vpow.pop %v1182
          %1185 = vset.pattern.permute.xlu0 0
          %1186 = vperm.xlu0 %1185, %v1180
          %v1187 = vpop.permute.xlu0 %1186
          %v1189 = vsub.f32 %v1175, %v1187
          %v1190 = vmul.f32 %v1189, 1.442695
          %v1191 = vpow.pop %v1190
          %v1192 = vld [vmem:[#allocation4] sm:$0xff]
          %v1193 = vmul.f32 %v1183, %v1192
          %v1194 = vsel %vm1128, %v1191, 0.0
          %1195 = vadd.xlane.f32.xlu0 %v1194
          %v1196 = vpop.xlane.xlu0 %1195
          %v1197 = vadd.f32 %v1193, %v1196
          %vm1198 = vcmask 7168
          %1199 = vst.msk [vmem:[#allocation4] sm:$0xff] %vm1198, %v1197
          %v1200 = vld [vmem:[#allocation5] sm:$0xff]
          %1202 = vset.pattern.permute.xlu0 0
          %1203 = vperm.xlu0 %1202, %v1183
          %v1204 = vpop.permute.xlu0 %1203
          %v1206 = vmul.f32 %v1204, %v1200
          %v1207 = vpack.c.bf16 %v1191, %v1191
          %1209 = vrot.lane.b32.xlu0 %v1117, 96
          %v1210 = vpop.permute.xlu0 %1209
          %v1212 = vsel %vm1128, %v1207, 0
          %vm1214 = vcmask 1043456
          %v1216 = vsel %vm1214, %v1210, 0
          %1218 = vmatprep.subr.bf16.mxu0 0
          %1219 = vmatpush1.bf16.msra.mxu0 %v1216
          %1220 = vmatprep.subr.bf16.mxu0 0
          %1221 = vmatpush1.bf16.msra.mxu0 0
          %1222 = vmatprep.subr.bf16.mxu0 0
          %1223 = vmatpush1.bf16.msra.mxu0 0
          %1224 = vmatprep.subr.bf16.mxu0 0
          %1225 = vmatpush1.bf16.msra.mxu0 0
          %1226 = vmatprep.subr.bf16.mxu0 0
          %1227 = vmatpush1.bf16.msra.mxu0 0
          %1228 = vmatprep.subr.bf16.mxu0 0
          %1229 = vmatpush1.bf16.msra.mxu0 0
          %1230 = vmatprep.subr.bf16.mxu0 0
          %1231 = vmatpush1.bf16.msra.mxu0 0
          %1232 = vmatprep.subr.bf16.mxu0 0
          %1233 = vmatpush1.bf16.msra.mxu0 0
          %1234 = vmatprep.subr.bf16.mxu0 0
          %1235 = vmatpush1.bf16.msra.mxu0 0
          %1236 = vmatprep.subr.bf16.mxu0 0
          %1237 = vmatpush1.bf16.msra.mxu0 0
          %1238 = vmatprep.subr.bf16.mxu0 0
          %1239 = vmatpush1.bf16.msra.mxu0 0
          %1240 = vmatprep.subr.bf16.mxu0 0
          %1241 = vmatpush1.bf16.msra.mxu0 0
          %1242 = vmatprep.subr.bf16.mxu0 0
          %1243 = vmatpush1.bf16.msra.mxu0 0
          %1244 = vmatprep.subr.bf16.mxu0 0
          %1245 = vmatpush1.bf16.msra.mxu0 0
          %1246 = vmatprep.subr.bf16.mxu0 0
          %1247 = vmatpush1.bf16.msra.mxu0 0
          %1248 = vmatprep.subr.bf16.mxu0 0
          %1249 = vmatpush1.bf16.msra.mxu0 0
          %1250 = vmatprep.mubr.bf16.mxu0 0
          %1251 = vmatmul.mubr.bf16.gmra.mrb[0].mxu0 %v1212
          %v1252 = vpop.f32.mrb[0].mxu0
          %v1253 = vadd.f32 0.0, %v1252
          %v1254 = vpop.f32.mrb[0].mxu0
          %v1255 = vpop.f32.mrb[0].mxu0
          %v1256 = vpop.f32.mrb[0].mxu0
          %1257 = vdwg.mxu0
          %v1258 = vadd.f32 %v1206, %v1253
          %1259 = vst.msk [vmem:[#allocation5] sm:$0xff] %vm1128, %v1258
          %1260 = vst.msk [vmem:[#allocation3] sm:$0xff] %vm1198, %v1180
          %v1262 = vunpack.c.l.b16 %v1127
          %v1263 = vpack.c.b16 %v1262, %v1262
          %1264 = vrot.lane.b32.xlu0 %v1263, 120
          %v1265 = vpop.permute.xlu0 %1264
          %1266 = vrot.lane.b32.xlu0 %v1117, 120
          %v1267 = vpop.permute.xlu0 %1266
          %v1269 = vsel %vm1128, %v1265, 0
          %v1272 = vsel %vm1128, %v1267, 0
          %1274 = vmatprep.subr.bf16.mxu0 0
          %1275 = vmatpush1.bf16.xpose.msra.mxu0 %v1272
          %1276 = vmatprep.subr.bf16.mxu0 0
          %1277 = vmatpush1.bf16.xpose.msra.mxu0 0
          %1278 = vmatprep.subr.bf16.mxu0 0
          %1279 = vmatpush1.bf16.xpose.msra.mxu0 0
          %1280 = vmatprep.subr.bf16.mxu0 0
          %1281 = vmatpush1.bf16.xpose.msra.mxu0 0
          %1282 = vmatprep.subr.bf16.mxu0 0
          %1283 = vmatpush1.bf16.xpose.msra.mxu0 0
          %1284 = vmatprep.subr.bf16.mxu0 0
          %1285 = vmatpush1.bf16.xpose.msra.mxu0 0
          %1286 = vmatprep.subr.bf16.mxu0 0
          %1287 = vmatpush1.bf16.xpose.msra.mxu0 0
          %1288 = vmatprep.subr.bf16.mxu0 0
          %1289 = vmatpush1.bf16.xpose.msra.mxu0 0
          %1290 = vmatprep.subr.bf16.mxu0 0
          %1291 = vmatpush1.bf16.xpose.msra.mxu0 0
          %1292 = vmatprep.subr.bf16.mxu0 0
          %1293 = vmatpush1.bf16.xpose.msra.mxu0 0
          %1294 = vmatprep.subr.bf16.mxu0 0
          %1295 = vmatpush1.bf16.xpose.msra.mxu0 0
          %1296 = vmatprep.subr.bf16.mxu0 0
          %1297 = vmatpush1.bf16.xpose.msra.mxu0 0
          %1298 = vmatprep.subr.bf16.mxu0 0
          %1299 = vmatpush1.bf16.xpose.msra.mxu0 0
          %1300 = vmatprep.subr.bf16.mxu0 0
          %1301 = vmatpush1.bf16.xpose.msra.mxu0 0
          %1302 = vmatprep.subr.bf16.mxu0 0
          %1303 = vmatpush1.bf16.xpose.msra.mxu0 0
          %1304 = vmatprep.subr.bf16.mxu0 0
          %1305 = vmatpush1.bf16.xpose.msra.mxu0 0
          %1306 = vmatprep.mubr.bf16.mxu0 0
          %1307 = vmatmul.mubr.bf16.gmra.mrb[0].mxu0 %v1269
          %v1308 = vpop.f32.mrb[0].mxu0
          %v1309 = vadd.f32 0.0, %v1308
          %v1310 = vpop.f32.mrb[0].mxu0
          %v1311 = vpop.f32.mrb[0].mxu0
          %v1312 = vpop.f32.mrb[0].mxu0
          %1313 = vdwg.mxu0
          %v1314 = vsel %vm1126, %v1309, -inf
          %v1315 = vsel %vm1128, %v1314, -inf
          %1316 = vmax.xlane.f32.xlu0 %v1315
          %v1317 = vpop.xlane.xlu0 %1316
          %v1318 = vld [vmem:[#allocation3] sm:$0xff]
          %v1319 = vmax.f32 %v1318, %v1317
          %v1320 = vsub.f32 %v1318, %v1319
          %v1321 = vmul.f32 %v1320, 1.442695
          %v1322 = vpow.pop %v1321
          %1324 = vset.pattern.permute.xlu0 1
          %1325 = vperm.xlu0 %1324, %v1319
          %v1326 = vpop.permute.xlu0 %1325
          %v1328 = vsub.f32 %v1314, %v1326
          %v1329 = vmul.f32 %v1328, 1.442695
          %v1330 = vpow.pop %v1329
          %v1331 = vld [vmem:[#allocation4] sm:$0xff]
          %v1332 = vmul.f32 %v1322, %v1331
          %v1333 = vsel %vm1128, %v1330, 0.0
          %1334 = vadd.xlane.f32.xlu0 %v1333
          %v1335 = vpop.xlane.xlu0 %1334
          %v1336 = vadd.f32 %v1332, %v1335
          %vm1337 = vcmask 15368
          %1338 = vst.msk [vmem:[#allocation4] sm:$0xff] %vm1337, %v1336
          %v1339 = vld [vmem:[#allocation5] sm:$0xff]
          %1341 = vset.pattern.permute.xlu0 1
          %1342 = vperm.xlu0 %1341, %v1322
          %v1343 = vpop.permute.xlu0 %1342
          %v1345 = vmul.f32 %v1343, %v1339
          %v1346 = vpack.c.bf16 %v1330, %v1330
          %1347 = vrot.lane.b32.xlu0 %v1117, 88
          %v1348 = vpop.permute.xlu0 %1347
          %v1350 = vsel %vm1128, %v1346, 0
          %v1353 = vsel %vm1214, %v1348, 0
          %1355 = vmatprep.subr.bf16.mxu0 0
          %1356 = vmatpush1.bf16.msra.mxu0 %v1353
          %1357 = vmatprep.subr.bf16.mxu0 0
          %1358 = vmatpush1.bf16.msra.mxu0 0
          %1359 = vmatprep.subr.bf16.mxu0 0
          %1360 = vmatpush1.bf16.msra.mxu0 0
          %1361 = vmatprep.subr.bf16.mxu0 0
          %1362 = vmatpush1.bf16.msra.mxu0 0
          %1363 = vmatprep.subr.bf16.mxu0 0
          %1364 = vmatpush1.bf16.msra.mxu0 0
          %1365 = vmatprep.subr.bf16.mxu0 0
          %1366 = vmatpush1.bf16.msra.mxu0 0
          %1367 = vmatprep.subr.bf16.mxu0 0
          %1368 = vmatpush1.bf16.msra.mxu0 0
          %1369 = vmatprep.subr.bf16.mxu0 0
          %1370 = vmatpush1.bf16.msra.mxu0 0
          %1371 = vmatprep.subr.bf16.mxu0 0
          %1372 = vmatpush1.bf16.msra.mxu0 0
          %1373 = vmatprep.subr.bf16.mxu0 0
          %1374 = vmatpush1.bf16.msra.mxu0 0
          %1375 = vmatprep.subr.bf16.mxu0 0
          %1376 = vmatpush1.bf16.msra.mxu0 0
          %1377 = vmatprep.subr.bf16.mxu0 0
          %1378 = vmatpush1.bf16.msra.mxu0 0
          %1379 = vmatprep.subr.bf16.mxu0 0
          %1380 = vmatpush1.bf16.msra.mxu0 0
          %1381 = vmatprep.subr.bf16.mxu0 0
          %1382 = vmatpush1.bf16.msra.mxu0 0
          %1383 = vmatprep.subr.bf16.mxu0 0
          %1384 = vmatpush1.bf16.msra.mxu0 0
          %1385 = vmatprep.subr.bf16.mxu0 0
          %1386 = vmatpush1.bf16.msra.mxu0 0
          %1387 = vmatprep.mubr.bf16.mxu0 0
          %1388 = vmatmul.mubr.bf16.gmra.mrb[0].mxu0 %v1350
          %v1389 = vpop.f32.mrb[0].mxu0
          %v1390 = vadd.f32 0.0, %v1389
          %v1391 = vpop.f32.mrb[0].mxu0
          %v1392 = vpop.f32.mrb[0].mxu0
          %v1393 = vpop.f32.mrb[0].mxu0
          %1394 = vdwg.mxu0
          %1396 = vrot.lane.b32.xlu0 %v1390, 8
          %v1397 = vpop.permute.xlu0 %1396
          %v1399 = vadd.f32 %v1345, %v1397
          %vm1400 = vcmask 130112
          %1401 = vst.msk [vmem:[#allocation5] sm:$0xff] %vm1400, %v1399
          %1402 = vst.msk [vmem:[#allocation3] sm:$0xff] %vm1337, %v1319
          %1403 = vrot.lane.b32.xlu0 %v1263, 112
          %v1404 = vpop.permute.xlu0 %1403
          %1405 = vrot.lane.b32.xlu0 %v1117, 112
          %v1406 = vpop.permute.xlu0 %1405
          %v1408 = vsel %vm1128, %v1404, 0
          %v1411 = vsel %vm1128, %v1406, 0
          %1413 = vmatprep.subr.bf16.mxu0 0
          %1414 = vmatpush1.bf16.xpose.msra.mxu0 %v1411
          %1415 = vmatprep.subr.bf16.mxu0 0
          %1416 = vmatpush1.bf16.xpose.msra.mxu0 0
          %1417 = vmatprep.subr.bf16.mxu0 0
          %1418 = vmatpush1.bf16.xpose.msra.mxu0 0
          %1419 = vmatprep.subr.bf16.mxu0 0
          %1420 = vmatpush1.bf16.xpose.msra.mxu0 0
          %1421 = vmatprep.subr.bf16.mxu0 0
          %1422 = vmatpush1.bf16.xpose.msra.mxu0 0
          %1423 = vmatprep.subr.bf16.mxu0 0
          %1424 = vmatpush1.bf16.xpose.msra.mxu0 0
          %1425 = vmatprep.subr.bf16.mxu0 0
          %1426 = vmatpush1.bf16.xpose.msra.mxu0 0
          %1427 = vmatprep.subr.bf16.mxu0 0
          %1428 = vmatpush1.bf16.xpose.msra.mxu0 0
          %1429 = vmatprep.subr.bf16.mxu0 0
          %1430 = vmatpush1.bf16.xpose.msra.mxu0 0
          %1431 = vmatprep.subr.bf16.mxu0 0
          %1432 = vmatpush1.bf16.xpose.msra.mxu0 0
          %1433 = vmatprep.subr.bf16.mxu0 0
          %1434 = vmatpush1.bf16.xpose.msra.mxu0 0
          %1435 = vmatprep.subr.bf16.mxu0 0
          %1436 = vmatpush1.bf16.xpose.msra.mxu0 0
          %1437 = vmatprep.subr.bf16.mxu0 0
          %1438 = vmatpush1.bf16.xpose.msra.mxu0 0
          %1439 = vmatprep.subr.bf16.mxu0 0
          %1440 = vmatpush1.bf16.xpose.msra.mxu0 0
          %1441 = vmatprep.subr.bf16.mxu0 0
          %1442 = vmatpush1.bf16.xpose.msra.mxu0 0
          %1443 = vmatprep.subr.bf16.mxu0 0
          %1444 = vmatpush1.bf16.xpose.msra.mxu0 0
          %1445 = vmatprep.mubr.bf16.mxu0 0
          %1446 = vmatmul.mubr.bf16.gmra.mrb[0].mxu0 %v1408
          %v1447 = vpop.f32.mrb[0].mxu0
          %v1448 = vadd.f32 0.0, %v1447
          %v1449 = vpop.f32.mrb[0].mxu0
          %v1450 = vpop.f32.mrb[0].mxu0
          %v1451 = vpop.f32.mrb[0].mxu0
          %1452 = vdwg.mxu0
          %v1453 = vsel %vm1126, %v1448, -inf
          %v1454 = vsel %vm1128, %v1453, -inf
          %1455 = vmax.xlane.f32.xlu0 %v1454
          %v1456 = vpop.xlane.xlu0 %1455
          %v1457 = vld [vmem:[#allocation3] sm:$0xff]
          %v1458 = vmax.f32 %v1457, %v1456
          %v1459 = vsub.f32 %v1457, %v1458
          %v1460 = vmul.f32 %v1459, 1.442695
          %v1461 = vpow.pop %v1460
          %1463 = vset.pattern.permute.xlu0 2
          %1464 = vperm.xlu0 %1463, %v1458
          %v1465 = vpop.permute.xlu0 %1464
          %v1467 = vsub.f32 %v1453, %v1465
          %v1468 = vmul.f32 %v1467, 1.442695
          %v1469 = vpow.pop %v1468
          %v1470 = vld [vmem:[#allocation4] sm:$0xff]
          %v1471 = vmul.f32 %v1461, %v1470
          %v1472 = vsel %vm1128, %v1469, 0.0
          %1473 = vadd.xlane.f32.xlu0 %v1472
          %v1474 = vpop.xlane.xlu0 %1473
          %v1475 = vadd.f32 %v1471, %v1474
          %vm1476 = vcmask 23568
          %1477 = vst.msk [vmem:[#allocation4] sm:$0xff] %vm1476, %v1475
          %v1478 = vld [vmem:[#allocation5] sm:$0xff]
          %1480 = vset.pattern.permute.xlu0 2
          %1481 = vperm.xlu0 %1480, %v1461
          %v1482 = vpop.permute.xlu0 %1481
          %v1484 = vmul.f32 %v1482, %v1478
          %v1485 = vpack.c.bf16 %v1469, %v1469
          %1486 = vrot.lane.b32.xlu0 %v1117, 80
          %v1487 = vpop.permute.xlu0 %1486
          %v1489 = vsel %vm1128, %v1485, 0
          %v1492 = vsel %vm1214, %v1487, 0
          %1494 = vmatprep.subr.bf16.mxu0 0
          %1495 = vmatpush1.bf16.msra.mxu0 %v1492
          %1496 = vmatprep.subr.bf16.mxu0 0
          %1497 = vmatpush1.bf16.msra.mxu0 0
          %1498 = vmatprep.subr.bf16.mxu0 0
          %1499 = vmatpush1.bf16.msra.mxu0 0
          %1500 = vmatprep.subr.bf16.mxu0 0
          %1501 = vmatpush1.bf16.msra.mxu0 0
          %1502 = vmatprep.subr.bf16.mxu0 0
          %1503 = vmatpush1.bf16.msra.mxu0 0
          %1504 = vmatprep.subr.bf16.mxu0 0
          %1505 = vmatpush1.bf16.msra.mxu0 0
          %1506 = vmatprep.subr.bf16.mxu0 0
          %1507 = vmatpush1.bf16.msra.mxu0 0
          %1508 = vmatprep.subr.bf16.mxu0 0
          %1509 = vmatpush1.bf16.msra.mxu0 0
          %1510 = vmatprep.subr.bf16.mxu0 0
          %1511 = vmatpush1.bf16.msra.mxu0 0
          %1512 = vmatprep.subr.bf16.mxu0 0
          %1513 = vmatpush1.bf16.msra.mxu0 0
          %1514 = vmatprep.subr.bf16.mxu0 0
          %1515 = vmatpush1.bf16.msra.mxu0 0
          %1516 = vmatprep.subr.bf16.mxu0 0
          %1517 = vmatpush1.bf16.msra.mxu0 0
          %1518 = vmatprep.subr.bf16.mxu0 0
          %1519 = vmatpush1.bf16.msra.mxu0 0
          %1520 = vmatprep.subr.bf16.mxu0 0
          %1521 = vmatpush1.bf16.msra.mxu0 0
          %1522 = vmatprep.subr.bf16.mxu0 0
          %1523 = vmatpush1.bf16.msra.mxu0 0
          %1524 = vmatprep.subr.bf16.mxu0 0
          %1525 = vmatpush1.bf16.msra.mxu0 0
          %1526 = vmatprep.mubr.bf16.mxu0 0
          %1527 = vmatmul.mubr.bf16.gmra.mrb[0].mxu0 %v1489
          %v1528 = vpop.f32.mrb[0].mxu0
          %v1529 = vadd.f32 0.0, %v1528
          %v1530 = vpop.f32.mrb[0].mxu0
          %v1531 = vpop.f32.mrb[0].mxu0
          %v1532 = vpop.f32.mrb[0].mxu0
          %1533 = vdwg.mxu0
          %1535 = vrot.lane.b32.xlu0 %v1529, 16
          %v1536 = vpop.permute.xlu0 %1535
          %v1538 = vadd.f32 %v1484, %v1536
          %vm1539 = vcmask 195712
          %1540 = vst.msk [vmem:[#allocation5] sm:$0xff] %vm1539, %v1538
          %1541 = vst.msk [vmem:[#allocation3] sm:$0xff] %vm1476, %v1458
          %1542 = vrot.lane.b32.xlu0 %v1263, 104
          %v1543 = vpop.permute.xlu0 %1542
          %1544 = vrot.lane.b32.xlu0 %v1117, 104
          %v1545 = vpop.permute.xlu0 %1544
          %v1547 = vsel %vm1128, %v1543, 0
          %v1550 = vsel %vm1128, %v1545, 0
          %1552 = vmatprep.subr.bf16.mxu0 0
          %1553 = vmatpush1.bf16.xpose.msra.mxu0 %v1550
          %1554 = vmatprep.subr.bf16.mxu0 0
          %1555 = vmatpush1.bf16.xpose.msra.mxu0 0
          %1556 = vmatprep.subr.bf16.mxu0 0
          %1557 = vmatpush1.bf16.xpose.msra.mxu0 0
          %1558 = vmatprep.subr.bf16.mxu0 0
          %1559 = vmatpush1.bf16.xpose.msra.mxu0 0
          %1560 = vmatprep.subr.bf16.mxu0 0
          %1561 = vmatpush1.bf16.xpose.msra.mxu0 0
          %1562 = vmatprep.subr.bf16.mxu0 0
          %1563 = vmatpush1.bf16.xpose.msra.mxu0 0
          %1564 = vmatprep.subr.bf16.mxu0 0
          %1565 = vmatpush1.bf16.xpose.msra.mxu0 0
          %1566 = vmatprep.subr.bf16.mxu0 0
          %1567 = vmatpush1.bf16.xpose.msra.mxu0 0
          %1568 = vmatprep.subr.bf16.mxu0 0
          %1569 = vmatpush1.bf16.xpose.msra.mxu0 0
          %1570 = vmatprep.subr.bf16.mxu0 0
          %1571 = vmatpush1.bf16.xpose.msra.mxu0 0
          %1572 = vmatprep.subr.bf16.mxu0 0
          %1573 = vmatpush1.bf16.xpose.msra.mxu0 0
          %1574 = vmatprep.subr.bf16.mxu0 0
          %1575 = vmatpush1.bf16.xpose.msra.mxu0 0
          %1576 = vmatprep.subr.bf16.mxu0 0
          %1577 = vmatpush1.bf16.xpose.msra.mxu0 0
          %1578 = vmatprep.subr.bf16.mxu0 0
          %1579 = vmatpush1.bf16.xpose.msra.mxu0 0
          %1580 = vmatprep.subr.bf16.mxu0 0
          %1581 = vmatpush1.bf16.xpose.msra.mxu0 0
          %1582 = vmatprep.subr.bf16.mxu0 0
          %1583 = vmatpush1.bf16.xpose.msra.mxu0 0
          %1584 = vmatprep.mubr.bf16.mxu0 0
          %1585 = vmatmul.mubr.bf16.gmra.mrb[0].mxu0 %v1547
          %v1586 = vpop.f32.mrb[0].mxu0
          %v1587 = vadd.f32 0.0, %v1586
          %v1588 = vpop.f32.mrb[0].mxu0
          %v1589 = vpop.f32.mrb[0].mxu0
          %v1590 = vpop.f32.mrb[0].mxu0
          %1591 = vdwg.mxu0
          %v1592 = vsel %vm1126, %v1587, -inf
          %v1593 = vsel %vm1128, %v1592, -inf
          %1594 = vmax.xlane.f32.xlu0 %v1593
          %v1595 = vpop.xlane.xlu0 %1594
          %v1596 = vld [vmem:[#allocation3] sm:$0xff]
          %v1597 = vmax.f32 %v1596, %v1595
          %v1598 = vsub.f32 %v1596, %v1597
          %v1599 = vmul.f32 %v1598, 1.442695
          %v1600 = vpow.pop %v1599
          %1602 = vset.pattern.permute.xlu0 3
          %1603 = vperm.xlu0 %1602, %v1597
          %v1604 = vpop.permute.xlu0 %1603
          %v1606 = vsub.f32 %v1592, %v1604
          %v1607 = vmul.f32 %v1606, 1.442695
          %v1608 = vpow.pop %v1607
          %v1609 = vld [vmem:[#allocation4] sm:$0xff]
          %v1610 = vmul.f32 %v1600, %v1609
          %v1611 = vsel %vm1128, %v1608, 0.0
          %1612 = vadd.xlane.f32.xlu0 %v1611
          %v1613 = vpop.xlane.xlu0 %1612
          %v1614 = vadd.f32 %v1610, %v1613
          %vm1615 = vcmask 31768
          %1616 = vst.msk [vmem:[#allocation4] sm:$0xff] %vm1615, %v1614
          %v1617 = vld [vmem:[#allocation5] sm:$0xff]
          %1619 = vset.pattern.permute.xlu0 3
          %1620 = vperm.xlu0 %1619, %v1600
          %v1621 = vpop.permute.xlu0 %1620
          %v1623 = vmul.f32 %v1621, %v1617
          %v1624 = vpack.c.bf16 %v1608, %v1608
          %1625 = vrot.lane.b32.xlu0 %v1117, 72
          %v1626 = vpop.permute.xlu0 %1625
          %v1628 = vsel %vm1128, %v1624, 0
          %v1631 = vsel %vm1214, %v1626, 0
          %1633 = vmatprep.subr.bf16.mxu0 0
          %1634 = vmatpush1.bf16.msra.mxu0 %v1631
          %1635 = vmatprep.subr.bf16.mxu0 0
          %1636 = vmatpush1.bf16.msra.mxu0 0
          %1637 = vmatprep.subr.bf16.mxu0 0
          %1638 = vmatpush1.bf16.msra.mxu0 0
          %1639 = vmatprep.subr.bf16.mxu0 0
          %1640 = vmatpush1.bf16.msra.mxu0 0
          %1641 = vmatprep.subr.bf16.mxu0 0
          %1642 = vmatpush1.bf16.msra.mxu0 0
          %1643 = vmatprep.subr.bf16.mxu0 0
          %1644 = vmatpush1.bf16.msra.mxu0 0
          %1645 = vmatprep.subr.bf16.mxu0 0
          %1646 = vmatpush1.bf16.msra.mxu0 0
          %1647 = vmatprep.subr.bf16.mxu0 0
          %1648 = vmatpush1.bf16.msra.mxu0 0
          %1649 = vmatprep.subr.bf16.mxu0 0
          %1650 = vmatpush1.bf16.msra.mxu0 0
          %1651 = vmatprep.subr.bf16.mxu0 0
          %1652 = vmatpush1.bf16.msra.mxu0 0
          %1653 = vmatprep.subr.bf16.mxu0 0
          %1654 = vmatpush1.bf16.msra.mxu0 0
          %1655 = vmatprep.subr.bf16.mxu0 0
          %1656 = vmatpush1.bf16.msra.mxu0 0
          %1657 = vmatprep.subr.bf16.mxu0 0
          %1658 = vmatpush1.bf16.msra.mxu0 0
          %1659 = vmatprep.subr.bf16.mxu0 0
          %1660 = vmatpush1.bf16.msra.mxu0 0
          %1661 = vmatprep.subr.bf16.mxu0 0
          %1662 = vmatpush1.bf16.msra.mxu0 0
          %1663 = vmatprep.subr.bf16.mxu0 0
          %1664 = vmatpush1.bf16.msra.mxu0 0
          %1665 = vmatprep.mubr.bf16.mxu0 0
          %1666 = vmatmul.mubr.bf16.gmra.mrb[0].mxu0 %v1628
          %v1667 = vpop.f32.mrb[0].mxu0
          %v1668 = vadd.f32 0.0, %v1667
          %v1669 = vpop.f32.mrb[0].mxu0
          %v1670 = vpop.f32.mrb[0].mxu0
          %v1671 = vpop.f32.mrb[0].mxu0
          %1672 = vdwg.mxu0
          %1674 = vrot.lane.b32.xlu0 %v1668, 24
          %v1675 = vpop.permute.xlu0 %1674
          %v1677 = vadd.f32 %v1623, %v1675
          %vm1678 = vcmask 261312
          %1679 = vst.msk [vmem:[#allocation5] sm:$0xff] %vm1678, %v1677
          %1680 = vst.msk [vmem:[#allocation3] sm:$0xff] %vm1615, %v1597
        $region76: #{tpu_custom_call.1} parent=51 // pred_fallthru
          _
        // Predicated region
        $region77: #{tpu_custom_call.1} parent=51 // pred_check
          %p1681 = pneg %p415
        $region78: #{tpu_custom_call.1} parent=51 // pred_check_branch
          %1683 = sbr.rel (%p1681) target = $region80
        $region79: #{tpu_custom_call.1} parent=51 // pred_region
          %v1684 = vld [vmem:[#allocation4] sm:$0xff]
          %v1685 = vrcp.pop %v1684
          %v1686 = vld [vmem:[#allocation5] sm:$0xff]
          %1688 = vset.pattern.permute.xlu0 0
          %1689 = vperm.xlu0 %1688, %v1685
          %v1690 = vpop.permute.xlu0 %1689
          %v1692 = vmul.f32 %v1686, %v1690
          %v1693 = vpack.c.bf16 %v1692, %v1692
          %1694 = vset.pattern.permute.xlu0 1
          %1695 = vperm.xlu0 %1694, %v1685
          %v1696 = vpop.permute.xlu0 %1695
          %v1698 = vmul.f32 %v1686, %v1696
          %v1699 = vpack.c.bf16 %v1698, %v1698
          %1700 = vset.pattern.permute.xlu0 2
          %1701 = vperm.xlu0 %1700, %v1685
          %v1702 = vpop.permute.xlu0 %1701
          %v1704 = vmul.f32 %v1686, %v1702
          %v1705 = vpack.c.bf16 %v1704, %v1704
          %1706 = vset.pattern.permute.xlu0 3
          %1707 = vperm.xlu0 %1706, %v1685
          %v1708 = vpop.permute.xlu0 %1707
          %v1710 = vmul.f32 %v1686, %v1708
          %v1711 = vpack.c.bf16 %v1710, %v1710
          %vm1712 = vcmask 64512
          %v1715 = vsel %vm1712, %v1693, %v1699
          %vm1716 = vcmask 130048
          %v1718 = vsel %vm1716, %v1715, %v1705
          %vm1719 = vcmask 195584
          %v1721 = vsel %vm1719, %v1718, %v1711
          %v1722 = vld [vmem:[%s6] sm:$0xf]
          %v1723 = vld [vmem:[%s6 + $0x4] sm:$0xf]
          %v1724 = vld [vmem:[%s6 + $0x8] sm:$0xf]
          %v1725 = vld [vmem:[%s6 + $0xc] sm:$0xf]
          %v1726 = vld [vmem:[%s7] sm:$0x1]
          %v1728 = vlaneseq
          %v1729 = vshrl.u32 %v1728, 7
          %v1730 = vsub.s32 0, %v1729
          %v1731 = vrot.slane %v1726, %v1730
          %v1737 = vunpack.c.l.b16 %v1722
          %v1738 = vunpack.c.l.b16 %v1723
          %v1739 = vunpack.c.l.b16 %v1724
          %v1740 = vunpack.c.l.b16 %v1725
          %v1741 = vpack.c.b16 %v1738, %v1737
          %v1742 = vpack.c.b16 %v1740, %v1739
          %vm1745 = vcmask 261120
          %v1746 = vsel %vm1745, %v1721, 0
          %1748 = vmatprep.subr.bf16.mxu0 0
          %1749 = vmatpush1.bf16.msra.mxu0 %v1741
          %1750 = vmatprep.subr.bf16.mxu0 0
          %1751 = vmatpush1.bf16.msra.mxu0 %v1742
          %1752 = vmatprep.subr.bf16.mxu0 0
          %1753 = vmatpush1.bf16.msra.mxu0 0
          %1754 = vmatprep.subr.bf16.mxu0 0
          %1755 = vmatpush1.bf16.msra.mxu0 0
          %1756 = vmatprep.subr.bf16.mxu0 0
          %1757 = vmatpush1.bf16.msra.mxu0 0
          %1758 = vmatprep.subr.bf16.mxu0 0
          %1759 = vmatpush1.bf16.msra.mxu0 0
          %1760 = vmatprep.subr.bf16.mxu0 0
          %1761 = vmatpush1.bf16.msra.mxu0 0
          %1762 = vmatprep.subr.bf16.mxu0 0
          %1763 = vmatpush1.bf16.msra.mxu0 0
          %1764 = vmatprep.subr.bf16.mxu0 0
          %1765 = vmatpush1.bf16.msra.mxu0 0
          %1766 = vmatprep.subr.bf16.mxu0 0
          %1767 = vmatpush1.bf16.msra.mxu0 0
          %1768 = vmatprep.subr.bf16.mxu0 0
          %1769 = vmatpush1.bf16.msra.mxu0 0
          %1770 = vmatprep.subr.bf16.mxu0 0
          %1771 = vmatpush1.bf16.msra.mxu0 0
          %1772 = vmatprep.subr.bf16.mxu0 0
          %1773 = vmatpush1.bf16.msra.mxu0 0
          %1774 = vmatprep.subr.bf16.mxu0 0
          %1775 = vmatpush1.bf16.msra.mxu0 0
          %1776 = vmatprep.subr.bf16.mxu0 0
          %1777 = vmatpush1.bf16.msra.mxu0 0
          %1778 = vmatprep.subr.bf16.mxu0 0
          %1779 = vmatpush1.bf16.msra.mxu0 0
          %1780 = vmatprep.mubr.bf16.mxu0 0
          %1781 = vmatmul.mubr.bf16.gmra.mrb[0].mxu0 %v1746
          %v1782 = vpop.f32.mrb[0].mxu0
          %v1783 = vadd.f32 %v1731, %v1782
          %v1784 = vpop.f32.mrb[0].mxu0
          %v1785 = vpop.f32.mrb[0].mxu0
          %v1786 = vpop.f32.mrb[0].mxu0
          %1787 = vdwg.mxu0
          %1788 = vst.msk [vmem:[%s413] sm:$0xff] %vm1745, %v1783
        $region80: #{tpu_custom_call.1} parent=51 // pred_fallthru
          _
        %s1789 = sand.u32 %s240, 1
        %s1790 = scalar_lea.sflag [#allocation8], %s1789
        %s1791 = sand.u32 %s240, 1
        %s1792 = smul.addr %s1791, 8
        %s1793 = scalar_lea.vmem [#allocation14], %s1792
        // Predicated region
        $region81: #{tpu_custom_call.1} parent=51 // pred_check
          %p1794 = pneg %p250
        $region82: #{tpu_custom_call.1} parent=51 // pred_check_branch
          %1796 = sbr.rel (%p1794) target = $region84
        $region83: #{tpu_custom_call.1} parent=51 // pred_region
          %s1798 = ssub.s32 128, 128
          %1799 = vsyncadd %s1790, %s1798
          %s1800 = sadd.s32 %s35, %s34
          %s1801 = smul.addr %s1800, 128
          %s1802 = scalar_lea.hbm %s8, %s1801
          %s1804 = sshll.u32 %s1793, 4
          %s1805 = int_to_ptr.vmem [resolvable:$true] %s1804
          %1807 = dma.vmem_to_hbm [thread:$0]  %s1805, 128, %s1802, %s1790
        $region84: #{tpu_custom_call.1} parent=51 // pred_fallthru
          _
      $region52: #{tpu_custom_call.1} parent=5 // pred_fallthru
        _
      %p1808 = scmp.le.s32.totalorder 2, %s24
      // Predicated region
      $region85: #{tpu_custom_call.1} parent=5 // pred_check
        %p1809 = pneg %p1808
      $region86: #{tpu_custom_call.1} parent=5 // pred_check_branch
        %1811 = sbr.rel (%p1809) target = $region88
      $region87: #{tpu_custom_call.1} parent=5 // pred_region
        %s1812 = ssub.s32 %s24, 2
        // Predicated region
        $region89: #{tpu_custom_call.1} parent=87 // pred_check
          %p1813 = pneg %p256
        $region90: #{tpu_custom_call.1} parent=87 // pred_check_branch
          %1815 = sbr.rel (%p1813) target = $region92
        $region91: #{tpu_custom_call.1} parent=87 // pred_region
          %s1816 = sand.u32 %s241, 1
          %s1817 = scalar_lea.sflag [#allocation8], %s1816
          %s1818 = sand.u32 %s241, 1
          %s1819 = smul.addr %s1818, 8
          %s1820 = scalar_lea.vmem [#allocation14], %s1819
          %1821 = dma.done %s1817, 128
        $region92: #{tpu_custom_call.1} parent=87 // pred_fallthru
          _
      $region88: #{tpu_custom_call.1} parent=5 // pred_fallthru
        _
    $region6: #{tpu_custom_call.1} parent=1 // loop_footer
      %s28 = sadd.s32 1, %s24
    $region7: #{tpu_custom_call.1} parent=1 // loop_footer_branch
      %23 = sbr.rel target = $region3
    $region8: #{tpu_custom_call.1} parent=1 // loop_exit
      _
    %1822 = vsyncpa [#allocation7], 1
    %s1823 = scalar_lea.sflag [#allocation7], 1
    %1824 = vsyncpa %s1823, 1
    %1825 = vsyncpa [#allocation10], 1
    %s1826 = scalar_lea.sflag [#allocation10], 1
    %1827 = vsyncpa %s1826, 1
    %1828 = vsyncpa [#allocation13], 1
    %1829 = vsyncpa [#allocation8], 1
    %s1830 = scalar_lea.sflag [#allocation8], 1
    %1831 = vsyncpa %s1830, 1

</llo_original>
